<compile_context>
chip_gen: v7x
topology: tpu7x:2x2x1
jax: 0.10.0
libtpu: 0.0.40
codegen_flags: <defaults>
</compile_context>

<pallas_src>
import functools

import jax
import jax.numpy as jnp
from jax.experimental import pallas as pl
from jax.experimental.pallas import tpu as pltpu

# ---------------------------------------------------------------------------
# Model hyper-parameters (from the PyTorch module)
# ---------------------------------------------------------------------------
TDNN_DIM = [512, 512, 512, 512, 1500]
TDNN_KERNEL = [5, 3, 3, 1, 1]
TDNN_DILATION = [1, 2, 3, 1, 1]
NUM_WAVLM_LAYERS = 13            # 12 + 1 hidden states
HIDDEN = 768
PROJ_DIM = 512
SPK_SCALE = 30.0
SPK_MARGIN = 0.4
SPK_TOP_K = 6
SPK_PENALTY = 0.1

C5_PAD = 1536                    # 1500 padded up to 12 * 128 (lane-dense)
VMEM_LIMIT = 32 * 1024 * 1024    # safe on v5e/v6e (128 MiB) and v7x (64 MiB)


def _round_up(x, m):
    return ((x + m - 1) // m) * m


def _pick_time_tile(t):
    """Largest nice time tile that divides t (falls back to full extent)."""
    for cand in (512, 256, 128):
        if t > cand and t % cand == 0:
            return cand
    return t


# ---------------------------------------------------------------------------
# Kernel 1: weighted layer sum, tiled over (batch, time)
# ---------------------------------------------------------------------------
def _layer_sum_kernel(h_ref, w_ref, o_ref):
    # h_ref: (1, L, tT, D) bf16   w_ref: (L, D) f32   o_ref: (1, tT, D) bf16
    L = h_ref.shape[1]
    acc = h_ref[0, 0, :, :].astype(jnp.float32) * w_ref[0:1, :]
    for l in range(1, L):                      # static unroll, L = 13
        acc = acc + h_ref[0, l, :, :].astype(jnp.float32) * w_ref[l:l + 1, :]
    o_ref[0, :, :] = acc.astype(o_ref.dtype)


def weighted_layer_sum(hidden_stack, norm_weights):
    B, L, T, D = hidden_stack.shape
    tT = _pick_time_tile(T)
    nt = T // tT
    w_b = jnp.broadcast_to(norm_weights.astype(jnp.float32)[:, None], (L, D))
    return pl.pallas_call(
        _layer_sum_kernel,
        out_shape=jax.ShapeDtypeStruct((B, T, D), jnp.bfloat16),
        grid=(B, nt),
        in_specs=[
            pl.BlockSpec((1, L, tT, D), lambda bi, ti: (bi, 0, ti, 0)),
            pl.BlockSpec((L, D), lambda bi, ti: (0, 0)),
        ],
        out_specs=pl.BlockSpec((1, tT, D), lambda bi, ti: (bi, ti, 0)),
        compiler_params=pltpu.CompilerParams(
            dimension_semantics=("parallel", "parallel"),
            vmem_limit_bytes=VMEM_LIMIT),
    )(hidden_stack.astype(jnp.bfloat16), w_b)


# ---------------------------------------------------------------------------
# Kernel 2: fused unfold + linear (+ ReLU) = dilated "TDNN conv" layer.
# Also used for the projector (k=1).  Grid: (batch, time-tiles, out-ch tiles).
# ---------------------------------------------------------------------------
def _tdnn_conv_kernel(x_ref, w_ref, b_ref, o_ref, *, k, dilation, relu):
    # x_ref: (1, T, C_in) bf16 (full time slab, resident per batch element)
    # w_ref: (k*C_in, tn)  bf16   b_ref: (1, tn) f32   o_ref: (1, tm, tn)
    tm = o_ref.shape[1]
    tn = o_ref.shape[2]
    c_in = x_ref.shape[2]
    start = pl.program_id(1) * tm
    if tm % 8 == 0:
        start = pl.multiple_of(start, 8)
    acc = jnp.zeros((tm, tn), jnp.float32)
    for j in range(k):                         # static unroll, k <= 5
        xj = x_ref[0, pl.ds(start + j * dilation, tm), :]
        wj = w_ref[j * c_in:(j + 1) * c_in, :]
        acc = acc + jnp.dot(xj, wj, preferred_element_type=jnp.float32)
    acc = acc + b_ref[...]
    if relu:
        acc = jnp.maximum(acc, 0.0)
    o_ref[0, :, :] = acc.astype(o_ref.dtype)


def tdnn_conv(x, w, b, *, kernel_size, dilation, relu,
              out_dtype=jnp.bfloat16, tn_max=512):
    B, T, C_in = x.shape
    KC, C_out = w.shape
    assert KC == kernel_size * C_in
    T_out = T - (kernel_size - 1) * dilation
    tm = _pick_time_tile(T_out)
    nt = T_out // tm
    tn = min(tn_max, C_out)
    assert C_out % tn == 0
    nn_tiles = C_out // tn
    b2 = b.reshape(1, C_out).astype(jnp.float32)
    kernel = functools.partial(_tdnn_conv_kernel, k=kernel_size,
                               dilation=dilation, relu=relu)
    return pl.pallas_call(
        kernel,
        out_shape=jax.ShapeDtypeStruct((B, T_out, C_out), out_dtype),
        grid=(B, nt, nn_tiles),
        in_specs=[
            pl.BlockSpec((1, T, C_in), lambda bi, ti, ni: (bi, 0, 0)),
            pl.BlockSpec((KC, tn), lambda bi, ti, ni: (0, ni)),
            pl.BlockSpec((1, tn), lambda bi, ti, ni: (0, ni)),
        ],
        out_specs=pl.BlockSpec((1, tm, tn), lambda bi, ti, ni: (bi, ti, ni)),
        compiler_params=pltpu.CompilerParams(
            dimension_semantics=("parallel", "parallel", "parallel"),
            vmem_limit_bytes=VMEM_LIMIT),
    )(x.astype(jnp.bfloat16), w.astype(jnp.bfloat16), b2)


# ---------------------------------------------------------------------------
# Kernel 3: masked statistic pooling (one masked pass: sum + sum-of-squares)
# ---------------------------------------------------------------------------
def _stats_pool_kernel(len_ref, h_ref, mean_ref, std_ref):
    i = pl.program_id(0)
    x = h_ref[0].astype(jnp.float32)                      # (T, C)
    T = x.shape[0]
    length = jnp.clip(len_ref[i], 1, T)                   # torch slicing clips high
    n = length.astype(jnp.float32)
    row = jax.lax.broadcasted_iota(jnp.int32, x.shape, 0)
    mask = (row < length).astype(jnp.float32)
    xm = x * mask
    s1 = jnp.sum(xm, axis=0, keepdims=True)               # (1, C)
    s2 = jnp.sum(xm * xm, axis=0, keepdims=True)          # (1, C)
    mean = s1 / n
    denom = jnp.maximum(n - 1.0, 1.0)                     # unbiased std, n>=2 guard
    var = jnp.maximum((s2 - n * mean * mean) / denom, 0.0)
    mean_ref[...] = mean
    std_ref[...] = jnp.sqrt(var)


def masked_stats_pool(hidden, lengths):
    B, T, C = hidden.shape
    grid_spec = pltpu.PrefetchScalarGridSpec(
        num_scalar_prefetch=1,
        grid=(B,),
        in_specs=[pl.BlockSpec((1, T, C), lambda i, lens: (i, 0, 0))],
        out_specs=[pl.BlockSpec((1, C), lambda i, lens: (i, 0)),
                   pl.BlockSpec((1, C), lambda i, lens: (i, 0))],
    )
    mean, std = pl.pallas_call(
        _stats_pool_kernel,
        grid_spec=grid_spec,
        out_shape=(jax.ShapeDtypeStruct((B, C), jnp.float32),
                   jax.ShapeDtypeStruct((B, C), jnp.float32)),
        compiler_params=pltpu.CompilerParams(
            dimension_semantics=("parallel",),
            vmem_limit_bytes=VMEM_LIMIT),
    )(lengths.astype(jnp.int32), hidden.astype(jnp.float32))
    return mean, std


# ---------------------------------------------------------------------------
# Kernel 4: fused dense tail
#   statistic_pooling -> xvector -> (spk classifier linear -> L2-norm -> cos)
#                                 -> (lang linear 1 -> lang linear 2)
# All intermediates stay in VMEM; single launch instead of five.
# ---------------------------------------------------------------------------
def _tail_kernel(sp_ref, few_ref, feb_ref, cw_ref, cb_ref, sw_ref,
                 l1w_ref, l1b_ref, l2w_ref, l2b_ref,
                 cos_ref, lang_ref, xvec_ref):
    xvec = jnp.dot(sp_ref[...], few_ref[...],
                   preferred_element_type=jnp.float32) + feb_ref[...]
    xvec_ref[...] = xvec
    xb = xvec.astype(jnp.bfloat16)

    # speaker branch: classifier linear -> row L2 normalize -> cosine scores
    h = jnp.dot(xb, cw_ref[...], preferred_element_type=jnp.float32) + cb_ref[...]
    ss = jnp.sum(h * h, axis=1, keepdims=True)
    h = h * jax.lax.rsqrt(jnp.maximum(ss, 1e-24))         # == v / max(||v||, 1e-12)
    cos_ref[...] = jnp.dot(h, sw_ref[...], preferred_element_type=jnp.float32)

    # language branch (grad_reverse is identity in the forward pass)
    g = jnp.dot(xb, l1w_ref[...], preferred_element_type=jnp.float32) + l1b_ref[...]
    lang_ref[...] = jnp.dot(g.astype(jnp.bfloat16), l2w_ref[...],
                            preferred_element_type=jnp.float32) + l2b_ref[...]


def fused_tail(kp, statistic_pooling):
    B = statistic_pooling.shape[0]
    n_spk_pad = kp["spk_w_norm"].shape[1]
    lang_pad = kp["lang_w2"].shape[1]
    return pl.pallas_call(
        _tail_kernel,
        out_shape=(jax.ShapeDtypeStruct((B, n_spk_pad), jnp.float32),
                   jax.ShapeDtypeStruct((B, lang_pad), jnp.float32),
                   jax.ShapeDtypeStruct((B, PROJ_DIM), jnp.float32)),
        compiler_params=pltpu.CompilerParams(vmem_limit_bytes=VMEM_LIMIT),
    )(statistic_pooling.astype(jnp.bfloat16),
      kp["fe_w"], kp["fe_b"].reshape(1, -1).astype(jnp.float32),
      kp["spk_cls_w"], kp["spk_cls_b"].reshape(1, -1).astype(jnp.float32),
      kp["spk_w_norm"],
      kp["lang_w1"], kp["lang_b1"].reshape(1, -1).astype(jnp.float32),
      kp["lang_w2"], kp["lang_b2"].reshape(1, -1).astype(jnp.float32))


# ---------------------------------------------------------------------------
# AM-softmax margin / top-k penalty (tiny (B, n_speaker) tensor -> plain JAX)
# ---------------------------------------------------------------------------
def am_softmax_logits(cos, labels, *, scale, margin, top_k, penalty):
    n_labels = cos.shape[1]
    labels = labels.reshape(-1)
    onehot = labels[:, None] == jnp.arange(n_labels)[None, :]
    _, top_idx = jax.lax.top_k(cos, top_k)
    pen_onehot = jnp.zeros(cos.shape, jnp.bool_).at[
        jnp.arange(cos.shape[0])[:, None], top_idx].set(True)
    cos_with_pen = jnp.where(pen_onehot, cos + penalty, cos)
    return scale * jnp.where(onehot, cos - margin, cos_with_pen)


# ---------------------------------------------------------------------------
# Length helpers (exactly as in the PyTorch module)
# ---------------------------------------------------------------------------
def _get_feat_extract_output_lengths(input_lengths):
    conv_kernel = [10, 3, 3, 3, 3, 2, 2]
    conv_stride = [5, 2, 2, 2, 2, 2, 2]
    for k, s in zip(conv_kernel, conv_stride):
        input_lengths = (input_lengths - k) // s + 1
    return input_lengths


def _get_tdnn_output_lengths(input_lengths):
    for k in TDNN_KERNEL:
        input_lengths = (input_lengths - k) // 1 + 1
    return input_lengths


# ---------------------------------------------------------------------------
# Parameter init (logical shapes) + kernel-ready (padded, bf16) params
# ---------------------------------------------------------------------------
def init_params(key, n_speaker):
    keys = jax.random.split(key, 12)

    def lin(k, din, dout, std=0.02):
        return (jax.random.normal(k, (din, dout), jnp.float32) * std,
                jnp.zeros((dout,), jnp.float32))

    params = {}
    params["layer_weights"] = jnp.ones((NUM_WAVLM_LAYERS,), jnp.float32) / NUM_WAVLM_LAYERS
    params["proj_w"], params["proj_b"] = lin(keys[0], HIDDEN, PROJ_DIM)

    tdnn = []
    for i in range(5):
        in_dim = TDNN_DIM[i - 1] if i > 0 else TDNN_DIM[i]
        tdnn.append(lin(keys[1 + i], in_dim * TDNN_KERNEL[i], TDNN_DIM[i]))
    params["tdnn"] = tdnn

    params["fe_w"], params["fe_b"] = lin(keys[6], TDNN_DIM[-1] * 2, PROJ_DIM)
    params["lang_w1"], params["lang_b1"] = lin(keys[7], PROJ_DIM, PROJ_DIM)
    params["lang_w2"], params["lang_b2"] = lin(keys[8], PROJ_DIM, 2)
    params["spk_cls_w"], params["spk_cls_b"] = lin(keys[9], PROJ_DIM, PROJ_DIM)
    params["spk_weight"] = jax.random.normal(keys[10], (PROJ_DIM, n_speaker), jnp.float32)
    return params


def prepare_kernel_params(params):
    """Zero-pad narrow axes to multiples of 128 and cast matmul weights to bf16."""
    kp = {}
    kp["layer_weights"] = params["layer_weights"]
    kp["proj_w"] = params["proj_w"].astype(jnp.bfloat16)
    kp["proj_b"] = params["proj_b"]

    tdnn = []
    for i in range(5):
        w, b = params["tdnn"][i]
        if i == 4:  # pad 1500 -> 1536 output channels (zero weight/bias, ReLU keeps 0)
            wp = jnp.zeros((w.shape[0], C5_PAD), jnp.float32).at[:, :TDNN_DIM[4]].set(w)
            bp = jnp.zeros((C5_PAD,), jnp.float32).at[:TDNN_DIM[4]].set(b)
            w, b = wp, bp
        tdnn.append((w.astype(jnp.bfloat16), b.astype(jnp.float32)))
    kp["tdnn"] = tdnn

    # feature_extractor: remap rows for the padded [mean(1536), std(1536)] layout
    few, feb = params["fe_w"], params["fe_b"]
    few_p = jnp.zeros((2 * C5_PAD, PROJ_DIM), jnp.float32)
    few_p = few_p.at[:TDNN_DIM[4], :].set(few[:TDNN_DIM[4]])
    few_p = few_p.at[C5_PAD:C5_PAD + TDNN_DIM[4], :].set(few[TDNN_DIM[4]:])
    kp["fe_w"] = few_p.astype(jnp.bfloat16)
    kp["fe_b"] = feb

    kp["spk_cls_w"] = params["spk_cls_w"].astype(jnp.bfloat16)
    kp["spk_cls_b"] = params["spk_cls_b"]

    sw = params["spk_weight"]
    n_spk = sw.shape[1]
    swn = sw / jnp.maximum(jnp.linalg.norm(sw, axis=0, keepdims=True), 1e-12)
    n_spk_pad = _round_up(n_spk, 128)
    kp["spk_w_norm"] = jnp.zeros((PROJ_DIM, n_spk_pad), jnp.float32).at[:, :n_spk].set(swn)
    kp["n_speaker"] = n_spk

    kp["lang_w1"] = params["lang_w1"].astype(jnp.bfloat16)
    kp["lang_b1"] = params["lang_b1"]
    lw2, lb2 = params["lang_w2"], params["lang_b2"]
    n_lang = lw2.shape[1]
    lpad = _round_up(n_lang, 128)
    kp["lang_w2"] = (jnp.zeros((PROJ_DIM, lpad), jnp.float32)
                     .at[:, :n_lang].set(lw2)).astype(jnp.bfloat16)
    kp["lang_b2"] = jnp.zeros((lpad,), jnp.float32).at[:n_lang].set(lb2)
    kp["n_lang"] = n_lang
    return kp


# ---------------------------------------------------------------------------
# Full forward
# ---------------------------------------------------------------------------
def wavlm_sv_forward(kp, hidden_stack, attn_masks, spkers):
    """hidden_stack: (B, 13, T, 768) synthesized WavLM hidden states."""
    # weighted layer sum (tiled over batch/time)
    norm_weights = jax.nn.softmax(kp["layer_weights"], axis=-1)
    hs = weighted_layer_sum(hidden_stack, norm_weights)           # (B, T, 768) bf16

    # projector (k=1 "conv")
    hs = tdnn_conv(hs, kp["proj_w"], kp["proj_b"],
                   kernel_size=1, dilation=1, relu=False)         # (B, T, 512)

    # TDNN stack: unfold fused into the matmul as shifted-window accumulation
    for i in range(5):
        w, b = kp["tdnn"][i]
        out_dtype = jnp.float32 if i == 4 else jnp.bfloat16       # f32 into stats pool
        hs = tdnn_conv(hs, w, b, kernel_size=TDNN_KERNEL[i],
                       dilation=TDNN_DILATION[i], relu=True, out_dtype=out_dtype)

    # masked statistic pooling with attention-mask-derived lengths
    feat_lens = _get_feat_extract_output_lengths(attn_masks.sum(axis=1).astype(jnp.int32))
    tdnn_lens = _get_tdnn_output_lengths(feat_lens)
    mean_f, std_f = masked_stats_pool(hs, tdnn_lens)              # (B, 1536) each
    statistic_pooling = jnp.concatenate([mean_f, std_f], axis=-1) # (B, 3072)

    # fused tail: xvector + speaker cosine scores + language logits
    cos_pad, lang_pad, xvector = fused_tail(kp, statistic_pooling)
    cos = cos_pad[:, :kp["n_speaker"]]
    spk_logits = am_softmax_logits(cos, spkers, scale=SPK_SCALE, margin=SPK_MARGIN,
                                   top_k=SPK_TOP_K, penalty=SPK_PENALTY)
    lang_logits = lang_pad[:, :kp["n_lang"]]
    # TODO(synk): grad_reverse only affects the backward pass; forward is identity.
    return spk_logits, lang_logits, xvector


# ---------------------------------------------------------------------------
if __name__ == "__main__":
    key = jax.random.PRNGKey(0)
    k_param, k_hidden = jax.random.split(key)

    B = 2
    T = 32                      # feature-extractor frames (10400 wav samples -> 32)
    WAV_LEN = 10400
    N_SPEAKER = 16

    params = init_params(k_param, N_SPEAKER)
    kparams = prepare_kernel_params(params)

    # Synthesized WavLM hidden-state stack (13 layers, 768-dim).
    hidden_stack = jax.random.normal(k_hidden, (B, NUM_WAVLM_LAYERS, T, HIDDEN),
                                     dtype=jnp.float32)

    # Attention masks over raw wav samples: example 0 fully valid, example 1 partial.
    attn_masks = jnp.zeros((B, WAV_LEN), jnp.int32)
    attn_masks = attn_masks.at[0, :].set(1)
    attn_masks = attn_masks.at[1, :8000].set(1)

    spkers = jnp.array([3, 7], dtype=jnp.int32)

    spk_logits, lang_logits, xvector = wavlm_sv_forward(
        kparams, hidden_stack, attn_masks, spkers)

    jax.block_until_ready((spk_logits, lang_logits, xvector))
    assert spk_logits.shape == (B, N_SPEAKER)
    assert lang_logits.shape == (B, 2)
    assert xvector.shape == (B, PROJ_DIM)
    assert bool(jnp.all(jnp.isfinite(spk_logits)))
    assert bool(jnp.all(jnp.isfinite(lang_logits)))
    assert bool(jnp.all(jnp.isfinite(xvector)))
    print("KERNEL_OK")
</pallas_src>

<mosaic_0001>
module attributes {stable_mosaic.version = 11 : i64} {
  func.func @_layer_sum_kernel(%arg0: i32, %arg1: i32, %arg2: memref<1x13x32x768xbf16, #tpu.memory_space<vmem>>, %arg3: memref<13x768xf32, #tpu.memory_space<vmem>>, %arg4: memref<1x32x768xbf16, #tpu.memory_space<vmem>>) attributes {dimension_semantics = [#tpu.dimension_semantics<parallel>, #tpu.dimension_semantics<parallel>], iteration_bounds = array<i64: 2, 1>, scalar_prefetch = 0 : i64, scratch_operands = 0 : i64, tpu.core_type = #tpu.core_type<tc>, window_params = [{transform_indices = @transform_0, window_bounds = array<i64: 1, 13, 32, 768>}, {pipeline_mode = #tpu.pipeline_mode<synchronous>, transform_indices = @transform_1, window_bounds = array<i64: 13, 768>}, {transform_indices = @transform_2, window_bounds = array<i64: 1, 32, 768>}]} {
    %c0 = arith.constant 0 : index
    %c0_0 = arith.constant 0 : index
    %c0_1 = arith.constant 0 : index
    %c0_2 = arith.constant 0 : index
    %0 = vector.load %arg2[%c0, %c0_0, %c0_1, %c0_2] : memref<1x13x32x768xbf16, #tpu.memory_space<vmem>>, vector<1x1x32x768xbf16>
    %1 = vector.shape_cast %0 : vector<1x1x32x768xbf16> to vector<32x768xbf16>
    %2 = arith.extf %1 : vector<32x768xbf16> to vector<32x768xf32>
    %c0_3 = arith.constant 0 : index
    %c0_4 = arith.constant 0 : index
    %3 = vector.load %arg3[%c0_3, %c0_4] : memref<13x768xf32, #tpu.memory_space<vmem>>, vector<1x768xf32>
    %4 = vector.broadcast %3 : vector<1x768xf32> to vector<32x768xf32>
    %5 = arith.mulf %2, %4 : vector<32x768xf32>
    %c0_5 = arith.constant 0 : index
    %c1 = arith.constant 1 : index
    %c0_6 = arith.constant 0 : index
    %c0_7 = arith.constant 0 : index
    %6 = vector.load %arg2[%c0_5, %c1, %c0_6, %c0_7] : memref<1x13x32x768xbf16, #tpu.memory_space<vmem>>, vector<1x1x32x768xbf16>
    %7 = vector.shape_cast %6 : vector<1x1x32x768xbf16> to vector<32x768xbf16>
    %8 = arith.extf %7 : vector<32x768xbf16> to vector<32x768xf32>
    %c1_8 = arith.constant 1 : index
    %c0_9 = arith.constant 0 : index
    %9 = vector.load %arg3[%c1_8, %c0_9] : memref<13x768xf32, #tpu.memory_space<vmem>>, vector<1x768xf32>
    %10 = vector.broadcast %9 : vector<1x768xf32> to vector<32x768xf32>
    %11 = arith.mulf %8, %10 : vector<32x768xf32>
    %12 = arith.addf %5, %11 : vector<32x768xf32>
    %c0_10 = arith.constant 0 : index
    %c2 = arith.constant 2 : index
    %c0_11 = arith.constant 0 : index
    %c0_12 = arith.constant 0 : index
    %13 = vector.load %arg2[%c0_10, %c2, %c0_11, %c0_12] : memref<1x13x32x768xbf16, #tpu.memory_space<vmem>>, vector<1x1x32x768xbf16>
    %14 = vector.shape_cast %13 : vector<1x1x32x768xbf16> to vector<32x768xbf16>
    %15 = arith.extf %14 : vector<32x768xbf16> to vector<32x768xf32>
    %c2_13 = arith.constant 2 : index
    %c0_14 = arith.constant 0 : index
    %16 = vector.load %arg3[%c2_13, %c0_14] : memref<13x768xf32, #tpu.memory_space<vmem>>, vector<1x768xf32>
    %17 = vector.broadcast %16 : vector<1x768xf32> to vector<32x768xf32>
    %18 = arith.mulf %15, %17 : vector<32x768xf32>
    %19 = arith.addf %12, %18 : vector<32x768xf32>
    %c0_15 = arith.constant 0 : index
    %c3 = arith.constant 3 : index
    %c0_16 = arith.constant 0 : index
    %c0_17 = arith.constant 0 : index
    %20 = vector.load %arg2[%c0_15, %c3, %c0_16, %c0_17] : memref<1x13x32x768xbf16, #tpu.memory_space<vmem>>, vector<1x1x32x768xbf16>
    %21 = vector.shape_cast %20 : vector<1x1x32x768xbf16> to vector<32x768xbf16>
    %22 = arith.extf %21 : vector<32x768xbf16> to vector<32x768xf32>
    %c3_18 = arith.constant 3 : index
    %c0_19 = arith.constant 0 : index
    %23 = vector.load %arg3[%c3_18, %c0_19] : memref<13x768xf32, #tpu.memory_space<vmem>>, vector<1x768xf32>
    %24 = vector.broadcast %23 : vector<1x768xf32> to vector<32x768xf32>
    %25 = arith.mulf %22, %24 : vector<32x768xf32>
    %26 = arith.addf %19, %25 : vector<32x768xf32>
    %c0_20 = arith.constant 0 : index
    %c4 = arith.constant 4 : index
    %c0_21 = arith.constant 0 : index
    %c0_22 = arith.constant 0 : index
    %27 = vector.load %arg2[%c0_20, %c4, %c0_21, %c0_22] : memref<1x13x32x768xbf16, #tpu.memory_space<vmem>>, vector<1x1x32x768xbf16>
    %28 = vector.shape_cast %27 : vector<1x1x32x768xbf16> to vector<32x768xbf16>
    %29 = arith.extf %28 : vector<32x768xbf16> to vector<32x768xf32>
    %c4_23 = arith.constant 4 : index
    %c0_24 = arith.constant 0 : index
    %30 = vector.load %arg3[%c4_23, %c0_24] : memref<13x768xf32, #tpu.memory_space<vmem>>, vector<1x768xf32>
    %31 = vector.broadcast %30 : vector<1x768xf32> to vector<32x768xf32>
    %32 = arith.mulf %29, %31 : vector<32x768xf32>
    %33 = arith.addf %26, %32 : vector<32x768xf32>
    %c0_25 = arith.constant 0 : index
    %c5 = arith.constant 5 : index
    %c0_26 = arith.constant 0 : index
    %c0_27 = arith.constant 0 : index
    %34 = vector.load %arg2[%c0_25, %c5, %c0_26, %c0_27] : memref<1x13x32x768xbf16, #tpu.memory_space<vmem>>, vector<1x1x32x768xbf16>
    %35 = vector.shape_cast %34 : vector<1x1x32x768xbf16> to vector<32x768xbf16>
    %36 = arith.extf %35 : vector<32x768xbf16> to vector<32x768xf32>
    %c5_28 = arith.constant 5 : index
    %c0_29 = arith.constant 0 : index
    %37 = vector.load %arg3[%c5_28, %c0_29] : memref<13x768xf32, #tpu.memory_space<vmem>>, vector<1x768xf32>
    %38 = vector.broadcast %37 : vector<1x768xf32> to vector<32x768xf32>
    %39 = arith.mulf %36, %38 : vector<32x768xf32>
    %40 = arith.addf %33, %39 : vector<32x768xf32>
    %c0_30 = arith.constant 0 : index
    %c6 = arith.constant 6 : index
    %c0_31 = arith.constant 0 : index
    %c0_32 = arith.constant 0 : index
    %41 = vector.load %arg2[%c0_30, %c6, %c0_31, %c0_32] : memref<1x13x32x768xbf16, #tpu.memory_space<vmem>>, vector<1x1x32x768xbf16>
    %42 = vector.shape_cast %41 : vector<1x1x32x768xbf16> to vector<32x768xbf16>
    %43 = arith.extf %42 : vector<32x768xbf16> to vector<32x768xf32>
    %c6_33 = arith.constant 6 : index
    %c0_34 = arith.constant 0 : index
    %44 = vector.load %arg3[%c6_33, %c0_34] : memref<13x768xf32, #tpu.memory_space<vmem>>, vector<1x768xf32>
    %45 = vector.broadcast %44 : vector<1x768xf32> to vector<32x768xf32>
    %46 = arith.mulf %43, %45 : vector<32x768xf32>
    %47 = arith.addf %40, %46 : vector<32x768xf32>
    %c0_35 = arith.constant 0 : index
    %c7 = arith.constant 7 : index
    %c0_36 = arith.constant 0 : index
    %c0_37 = arith.constant 0 : index
    %48 = vector.load %arg2[%c0_35, %c7, %c0_36, %c0_37] : memref<1x13x32x768xbf16, #tpu.memory_space<vmem>>, vector<1x1x32x768xbf16>
    %49 = vector.shape_cast %48 : vector<1x1x32x768xbf16> to vector<32x768xbf16>
    %50 = arith.extf %49 : vector<32x768xbf16> to vector<32x768xf32>
    %c7_38 = arith.constant 7 : index
    %c0_39 = arith.constant 0 : index
    %51 = vector.load %arg3[%c7_38, %c0_39] : memref<13x768xf32, #tpu.memory_space<vmem>>, vector<1x768xf32>
    %52 = vector.broadcast %51 : vector<1x768xf32> to vector<32x768xf32>
    %53 = arith.mulf %50, %52 : vector<32x768xf32>
    %54 = arith.addf %47, %53 : vector<32x768xf32>
    %c0_40 = arith.constant 0 : index
    %c8 = arith.constant 8 : index
    %c0_41 = arith.constant 0 : index
    %c0_42 = arith.constant 0 : index
    %55 = vector.load %arg2[%c0_40, %c8, %c0_41, %c0_42] : memref<1x13x32x768xbf16, #tpu.memory_space<vmem>>, vector<1x1x32x768xbf16>
    %56 = vector.shape_cast %55 : vector<1x1x32x768xbf16> to vector<32x768xbf16>
    %57 = arith.extf %56 : vector<32x768xbf16> to vector<32x768xf32>
    %c8_43 = arith.constant 8 : index
    %c0_44 = arith.constant 0 : index
    %58 = vector.load %arg3[%c8_43, %c0_44] : memref<13x768xf32, #tpu.memory_space<vmem>>, vector<1x768xf32>
    %59 = vector.broadcast %58 : vector<1x768xf32> to vector<32x768xf32>
    %60 = arith.mulf %57, %59 : vector<32x768xf32>
    %61 = arith.addf %54, %60 : vector<32x768xf32>
    %c0_45 = arith.constant 0 : index
    %c9 = arith.constant 9 : index
    %c0_46 = arith.constant 0 : index
    %c0_47 = arith.constant 0 : index
    %62 = vector.load %arg2[%c0_45, %c9, %c0_46, %c0_47] : memref<1x13x32x768xbf16, #tpu.memory_space<vmem>>, vector<1x1x32x768xbf16>
    %63 = vector.shape_cast %62 : vector<1x1x32x768xbf16> to vector<32x768xbf16>
    %64 = arith.extf %63 : vector<32x768xbf16> to vector<32x768xf32>
    %c9_48 = arith.constant 9 : index
    %c0_49 = arith.constant 0 : index
    %65 = vector.load %arg3[%c9_48, %c0_49] : memref<13x768xf32, #tpu.memory_space<vmem>>, vector<1x768xf32>
    %66 = vector.broadcast %65 : vector<1x768xf32> to vector<32x768xf32>
    %67 = arith.mulf %64, %66 : vector<32x768xf32>
    %68 = arith.addf %61, %67 : vector<32x768xf32>
    %c0_50 = arith.constant 0 : index
    %c10 = arith.constant 10 : index
    %c0_51 = arith.constant 0 : index
    %c0_52 = arith.constant 0 : index
    %69 = vector.load %arg2[%c0_50, %c10, %c0_51, %c0_52] : memref<1x13x32x768xbf16, #tpu.memory_space<vmem>>, vector<1x1x32x768xbf16>
    %70 = vector.shape_cast %69 : vector<1x1x32x768xbf16> to vector<32x768xbf16>
    %71 = arith.extf %70 : vector<32x768xbf16> to vector<32x768xf32>
    %c10_53 = arith.constant 10 : index
    %c0_54 = arith.constant 0 : index
    %72 = vector.load %arg3[%c10_53, %c0_54] : memref<13x768xf32, #tpu.memory_space<vmem>>, vector<1x768xf32>
    %73 = vector.broadcast %72 : vector<1x768xf32> to vector<32x768xf32>
    %74 = arith.mulf %71, %73 : vector<32x768xf32>
    %75 = arith.addf %68, %74 : vector<32x768xf32>
    %c0_55 = arith.constant 0 : index
    %c11 = arith.constant 11 : index
    %c0_56 = arith.constant 0 : index
    %c0_57 = arith.constant 0 : index
    %76 = vector.load %arg2[%c0_55, %c11, %c0_56, %c0_57] : memref<1x13x32x768xbf16, #tpu.memory_space<vmem>>, vector<1x1x32x768xbf16>
    %77 = vector.shape_cast %76 : vector<1x1x32x768xbf16> to vector<32x768xbf16>
    %78 = arith.extf %77 : vector<32x768xbf16> to vector<32x768xf32>
    %c11_58 = arith.constant 11 : index
    %c0_59 = arith.constant 0 : index
    %79 = vector.load %arg3[%c11_58, %c0_59] : memref<13x768xf32, #tpu.memory_space<vmem>>, vector<1x768xf32>
    %80 = vector.broadcast %79 : vector<1x768xf32> to vector<32x768xf32>
    %81 = arith.mulf %78, %80 : vector<32x768xf32>
    %82 = arith.addf %75, %81 : vector<32x768xf32>
    %c0_60 = arith.constant 0 : index
    %c12 = arith.constant 12 : index
    %c0_61 = arith.constant 0 : index
    %c0_62 = arith.constant 0 : index
    %83 = vector.load %arg2[%c0_60, %c12, %c0_61, %c0_62] : memref<1x13x32x768xbf16, #tpu.memory_space<vmem>>, vector<1x1x32x768xbf16>
    %84 = vector.shape_cast %83 : vector<1x1x32x768xbf16> to vector<32x768xbf16>
    %85 = arith.extf %84 : vector<32x768xbf16> to vector<32x768xf32>
    %c12_63 = arith.constant 12 : index
    %c0_64 = arith.constant 0 : index
    %86 = vector.load %arg3[%c12_63, %c0_64] : memref<13x768xf32, #tpu.memory_space<vmem>>, vector<1x768xf32>
    %87 = vector.broadcast %86 : vector<1x768xf32> to vector<32x768xf32>
    %88 = arith.mulf %85, %87 : vector<32x768xf32>
    %89 = arith.addf %82, %88 : vector<32x768xf32>
    %90 = arith.truncf %89 : vector<32x768xf32> to vector<32x768xbf16>
    %c0_65 = arith.constant 0 : index
    %c0_66 = arith.constant 0 : index
    %c0_67 = arith.constant 0 : index
    %91 = vector.load %arg4[%c0_65, %c0_66, %c0_67] : memref<1x32x768xbf16, #tpu.memory_space<vmem>>, vector<1x32x768xbf16>
    %92 = vector.shape_cast %91 : vector<1x32x768xbf16> to vector<32x768xbf16>
    %93 = vector.shape_cast %90 : vector<32x768xbf16> to vector<1x32x768xbf16>
    tpu.vector_store %arg4[%c0_65, %c0_66, %c0_67], %93 {strides = array<i32>} : memref<1x32x768xbf16, #tpu.memory_space<vmem>>, vector<1x32x768xbf16>,
    return
  }
  func.func @transform_0(%arg0: i32, %arg1: i32) -> (i32, i32, i32, i32) {
    %c0_i32 = arith.constant 0 : i32
    %c0_i32_0 = arith.constant 0 : i32
    %c0_i32_1 = arith.constant 0 : i32
    return %arg0, %c0_i32, %arg1, %c0_i32_0 : i32, i32, i32, i32
  }
  func.func @transform_1(%arg0: i32, %arg1: i32) -> (i32, i32) {
    %c0_i32 = arith.constant 0 : i32
    %c0_i32_0 = arith.constant 0 : i32
    %c0_i32_1 = arith.constant 0 : i32
    return %c0_i32, %c0_i32_0 : i32, i32
  }
  func.func @transform_2(%arg0: i32, %arg1: i32) -> (i32, i32, i32) {
    %c0_i32 = arith.constant 0 : i32
    %c0_i32_0 = arith.constant 0 : i32
    return %arg0, %arg1, %c0_i32 : i32, i32, i32
  }
}

</mosaic_0001>

<llo_original>
// kernel: tpu_custom_call.1
$region0: #{tpu_custom_call.1}
  #allocation0 [shape = 'u32[]', space=smem, size = 0x4, offset = 0x4, fixed_abs, tag = 'smem constant byte address 0x4 - core index']
  #allocation1 [shape = 'u32[144,128]{1,0:T(1,128)}', space=vmem, size = 0x12000, scoped, tag = 'internal scratch']
  %s0 = inlined_call_operand.hbm [shape: bf16[2,13,32,768], index: 0, kind: input, shape index: {}]
  %s1 = inlined_call_operand.hbm [shape: f32[13,768], index: 1, kind: input, shape index: {}]
  %s2 = inlined_call_operand.hbm [shape: bf16[2,32,768], index: 2, kind: output, shape index: {}]
  %s3 = sld [smem:[#allocation0]]
  $region49: #{tpu_custom_call.1} parent=0
    _
  %s5 = ssub.s32 1, %s3
  %s6 = scalar_select 0, %s5, %s3
  $region1: #{tpu_custom_call.1} parent=0
    #allocation2 [shape = 'u8[1277952]{0}', space=vmem, size = 0x138000, scoped, tag = 'input window, operand 0']
    #allocation3 [shape = 's32[2]{0}', space=sflag, size = 0x8, scoped, tag = 'scoped memory for tpu_custom_call.1']
    #allocation4 [shape = 's32[2]{0}', space=sflag, size = 0x8, scoped, tag = 'scoped memory for tpu_custom_call.1']
    #allocation5 [shape = 'u8[49152]{0}', space=vmem, size = 0xc000, scoped, tag = 'input window, operand 1, single buffered']
    #allocation6 [shape = 's32[1]{0}', space=sflag, size = 0x4, scoped, tag = 'scoped memory for tpu_custom_call.1']
    #allocation7 [shape = 'u8[98304]{0}', space=vmem, size = 0x18000, scoped, tag = 'output window, operand 0']
    %7 = vsyncpa [#allocation3], 0
    %s8 = scalar_lea.sflag [#allocation3], 1
    %9 = vsyncpa %s8, 0
    %10 = vsyncpa [#allocation6], 0
    %11 = vsyncpa [#allocation4], 0
    %s12 = scalar_lea.sflag [#allocation4], 1
    %13 = vsyncpa %s12, 0
    loop: start=0, step=1, limit=4
    $region2: #{tpu_custom_call.1} parent=1 // loop_pre_header
      _
    $region3: #{tpu_custom_call.1} parent=1 // loop_header
      %s15 = sphi 0, %s19
      %p16 = scmp.ge.s32.totalorder %s15, 4
      %s22 = sphi 0, %s34
      %s23 = sphi 0, %s30
      %s24 = sphi 0, %s22
      %s25 = sphi 0, %s23
      %s26 = sphi 0, %s24
      %s27 = sphi 0, %s25
      %s39 = sphi 0, %s41
      %s42 = sphi 0, %s39
      %s43 = sphi 0, %s42
      %s59 = sphi 0, %s43
      %s63 = sphi 0, %s63
      %s65 = sphi 0, %s63
      %s66 = sphi 0, %s65
      %s80 = sphi 0, %s66
      %s88 = sphi 0, %s90
      %s91 = sphi 0, %s88
      %s92 = sphi 0, %s91
      %s108 = sphi 0, %s92
    $region4: #{tpu_custom_call.1} parent=1 // loop_header_branch
      %18 = sbr.rel (%p16) target = $region8
    $region5: #{tpu_custom_call.1} parent=1 // loop_body
      %s20 = ssub.s32 %s15, 1
      %s21 = ssub.s32 %s15, 2
      %s28 = sadd.s32 1, %s23
      %p29 = scmp.ge.s32.totalorder %s28, 1
      %s30 = scalar_select %p29, 0, %s28
      %s31 = sadd.s32 1, %s22
      %s32 = scalar_select %p29, %s31, %s22
      %p33 = scmp.ge.s32.totalorder %s32, 2
      %s34 = scalar_select %p33, 0, %s32
      %s35 = ssub.s32 %s22, %s34
      %s36 = ssub.s32 %s23, %s30
      %s37 = sor.u32 %s35, %s36
      %p38 = scmp.eq.s32.totalorder %s37, 0
      %s40 = sadd.s32 %s39, 1
      %s41 = scalar_select %p38, %s39, %s40
      %p44 = pneg %p38
      %p45 = scmp.eq.s32.totalorder %s15, 1
      %p46 = por %p44, %p45
      %p47 = scmp.ne.s32.totalorder %s39, %s42
      %p48 = scmp.eq.s32.totalorder %s15, 0
      %p49 = por %p47, %p48
      %p50 = scmp.ne.s32.totalorder %s39, %s42
      %p51 = scmp.eq.s32.totalorder %s20, 1
      %p52 = por %p50, %p51
      %p53 = scmp.ne.s32.totalorder %s42, %s43
      %p54 = scmp.eq.s32.totalorder %s20, 0
      %p55 = por %p53, %p54
      %p56 = scmp.ne.s32.totalorder %s42, %s43
      %p57 = scmp.eq.s32.totalorder %s21, 1
      %p58 = por %p56, %p57
      %p60 = scmp.ne.s32.totalorder %s43, %s59
      %p61 = scmp.eq.s32.totalorder %s21, 0
      %p62 = por %p60, %p61
      %s64 = sadd.s32 %s63, 1
      %p67 = scmp.eq.s32.totalorder %s15, 1
      %p68 = scmp.ne.s32.totalorder %s63, %s65
      %p69 = scmp.eq.s32.totalorder %s15, 0
      %p70 = por %p68, %p69
      %p71 = scmp.ne.s32.totalorder %s63, %s65
      %p72 = scmp.eq.s32.totalorder %s20, 1
      %p73 = por %p71, %p72
      %p74 = scmp.ne.s32.totalorder %s65, %s66
      %p75 = scmp.eq.s32.totalorder %s20, 0
      %p76 = por %p74, %p75
      %p77 = scmp.ne.s32.totalorder %s65, %s66
      %p78 = scmp.eq.s32.totalorder %s21, 1
      %p79 = por %p77, %p78
      %p81 = scmp.ne.s32.totalorder %s66, %s80
      %p82 = scmp.eq.s32.totalorder %s21, 0
      %p83 = por %p81, %p82
      %s84 = ssub.s32 %s22, %s34
      %s85 = ssub.s32 %s23, %s30
      %s86 = sor.u32 %s84, %s85
      %p87 = scmp.eq.s32.totalorder %s86, 0
      %s89 = sadd.s32 %s88, 1
      %s90 = scalar_select %p87, %s88, %s89
      %p93 = pneg %p87
      %p94 = scmp.eq.s32.totalorder %s15, 1
      %p95 = por %p93, %p94
      %p96 = scmp.ne.s32.totalorder %s88, %s91
      %p97 = scmp.eq.s32.totalorder %s15, 0
      %p98 = por %p96, %p97
      %p99 = scmp.ne.s32.totalorder %s88, %s91
      %p100 = scmp.eq.s32.totalorder %s20, 1
      %p101 = por %p99, %p100
      %p102 = scmp.ne.s32.totalorder %s91, %s92
      %p103 = scmp.eq.s32.totalorder %s20, 0
      %p104 = por %p102, %p103
      %p105 = scmp.ne.s32.totalorder %s91, %s92
      %p106 = scmp.eq.s32.totalorder %s21, 1
      %p107 = por %p105, %p106
      %p109 = scmp.ne.s32.totalorder %s92, %s108
      %p110 = scmp.eq.s32.totalorder %s21, 0
      %p111 = por %p109, %p110
      %p112 = scmp.le.s32.totalorder 1, %s15
      %p113 = scmp.lt.s32.totalorder %s15, 3
      %p114 = pnand %p112, %p113
      %p115 = pneg %p114
      // Predicated region
      $region9: #{tpu_custom_call.1} parent=5 // pred_check
        _
      $region10: #{tpu_custom_call.1} parent=5 // pred_check_branch
        %117 = sbr.rel (%p114) target = $region12
      $region11: #{tpu_custom_call.1} parent=5 // pred_region
        %s118 = ssub.s32 %s15, 1
        // Predicated region
        $region13: #{tpu_custom_call.1} parent=11 // pred_check
          %p119 = pneg %p76
        $region14: #{tpu_custom_call.1} parent=11 // pred_check_branch
          %121 = sbr.rel (%p119) target = $region16
        $region15: #{tpu_custom_call.1} parent=11 // pred_region
          %s123 = ssub.s32 1536, 1536
          %124 = vsyncadd [#allocation6], %s123
          %s125 = sshll.u32 [#allocation5], 4
          %s126 = int_to_ptr.vmem [resolvable:$true] %s125
          %131 = dma.hbm_to_vmem [thread:$0]  %s1, 1536, %s126, [#allocation6], 768, 768, 48
        $region16: #{tpu_custom_call.1} parent=11 // pred_fallthru
          _
      $region12: #{tpu_custom_call.1} parent=5 // pred_fallthru
        _
      %p132 = scmp.lt.s32.totalorder %s15, 2
      // Predicated region
      $region17: #{tpu_custom_call.1} parent=5 // pred_check
        %p133 = pneg %p132
      $region18: #{tpu_custom_call.1} parent=5 // pred_check_branch
        %135 = sbr.rel (%p133) target = $region20
      $region19: #{tpu_custom_call.1} parent=5 // pred_region
        // Predicated region
        $region21: #{tpu_custom_call.1} parent=19 // pred_check
          %p136 = pneg %p49
        $region22: #{tpu_custom_call.1} parent=19 // pred_check_branch
          %138 = sbr.rel (%p136) target = $region24
        $region23: #{tpu_custom_call.1} parent=19 // pred_region
          %s139 = sand.u32 %s39, 1
          %s140 = scalar_lea.sflag [#allocation3], %s139
          %s141 = sand.u32 %s39, 1
          %s142 = smul.addr %s141, 1248
          %s143 = scalar_lea.vmem [#allocation2], %s142
          %s144 = smul.u32 4, %s23
          %s146 = ssub.s32 19968, 19968
          %147 = vsyncadd %s140, %s146
          %s148 = smul.addr %s144, 6
          %s149 = smul.addr %s22, 312
          %s150 = sadd.s32 %s148, %s149
          %s151 = smul.addr %s150, 64
          %s152 = scalar_lea.hbm %s0, %s151
          %s153 = sshll.u32 %s143, 4
          %s154 = int_to_ptr.vmem [resolvable:$true] %s153
          %159 = dma.hbm_to_vmem [thread:$0]  %s152, 19968, %s154, %s140, 384, 384, 24
        $region24: #{tpu_custom_call.1} parent=19 // pred_fallthru
          _
      $region20: #{tpu_custom_call.1} parent=5 // pred_fallthru
        _
      %p160 = scmp.le.s32.totalorder 1, %s15
      %p161 = scmp.lt.s32.totalorder %s15, 3
      %p162 = pnand %p160, %p161
      %p163 = pneg %p162
      // Predicated region
      $region25: #{tpu_custom_call.1} parent=5 // pred_check
        _
      $region26: #{tpu_custom_call.1} parent=5 // pred_check_branch
        %165 = sbr.rel (%p162) target = $region28
      $region27: #{tpu_custom_call.1} parent=5 // pred_region
        %s166 = ssub.s32 %s15, 1
        %s167 = sand.u32 %s42, 1
        %s168 = scalar_lea.sflag [#allocation3], %s167
        %s169 = sand.u32 %s42, 1
        %s170 = smul.addr %s169, 1248
        %s171 = scalar_lea.vmem [#allocation2], %s170
        // Predicated region
        $region29: #{tpu_custom_call.1} parent=27 // pred_check
          %p172 = pneg %p55
        $region30: #{tpu_custom_call.1} parent=27 // pred_check_branch
          %174 = sbr.rel (%p172) target = $region32
        $region31: #{tpu_custom_call.1} parent=27 // pred_region
          %175 = dma.done %s168, 19968
        $region32: #{tpu_custom_call.1} parent=27 // pred_fallthru
          _
        // Predicated region
        $region33: #{tpu_custom_call.1} parent=27 // pred_check
          %p176 = pneg %p76
        $region34: #{tpu_custom_call.1} parent=27 // pred_check_branch
          %178 = sbr.rel (%p176) target = $region36
        $region35: #{tpu_custom_call.1} parent=27 // pred_region
          %179 = dma.done [#allocation6], 1536
        $region36: #{tpu_custom_call.1} parent=27 // pred_fallthru
          _
        %s180 = sand.u32 %s42, 1
        %s181 = scalar_lea.sflag [#allocation3], %s180
        %s182 = sand.u32 %s42, 1
        %s183 = smul.addr %s182, 1248
        %s184 = scalar_lea.vmem [#allocation2], %s183
        %p185 = pneg %p55
        %p186 = pneg %p52
        %p187 = pneg %p76
        %p188 = pneg %p73
        %p189 = pneg %p104
        %p190 = pneg %p101
        %s191 = sand.u32 %s91, 1
        %s192 = scalar_lea.sflag [#allocation4], %s191
        %s193 = sand.u32 %s91, 1
        %s194 = smul.addr %s193, 96
        %s195 = scalar_lea.vmem [#allocation7], %s194
        %s196 = smul.u32 4, %s25
        %s197 = smul.u32 4, %s25
        %v198 = vld [vmem:[%s171] sm:$0xff]
        %v199 = vld [vmem:[%s171 + $0x8] sm:$0xff]
        %v200 = vld [vmem:[%s171 + $0x10] sm:$0xff]
        %v201 = vld [vmem:[%s171 + $0x18] sm:$0xff]
        %v202 = vld [vmem:[%s171 + $0x20] sm:$0xff]
        %v203 = vld [vmem:[%s171 + $0x28] sm:$0xff]
        %v204 = vld [vmem:[%s171 + $0x30] sm:$0xff]
        %v205 = vld [vmem:[%s171 + $0x38] sm:$0xff]
        %v206 = vld [vmem:[%s171 + $0x40] sm:$0xff]
        %v207 = vld [vmem:[%s171 + $0x48] sm:$0xff]
        %v208 = vld [vmem:[%s171 + $0x50] sm:$0xff]
        %v209 = vld [vmem:[%s171 + $0x58] sm:$0xff]
        %v210 = vunpack.c.l.bf16 %v198
        %v211 = vunpack.c.h.bf16 %v198
        %v212 = vunpack.c.l.bf16 %v199
        %v213 = vunpack.c.h.bf16 %v199
        %v214 = vunpack.c.l.bf16 %v200
        %v215 = vunpack.c.h.bf16 %v200
        %v216 = vunpack.c.l.bf16 %v201
        %v217 = vunpack.c.h.bf16 %v201
        %v218 = vunpack.c.l.bf16 %v202
        %v219 = vunpack.c.h.bf16 %v202
        %v220 = vunpack.c.l.bf16 %v203
        %v221 = vunpack.c.h.bf16 %v203
        %v222 = vunpack.c.l.bf16 %v204
        %v223 = vunpack.c.h.bf16 %v204
        %v224 = vunpack.c.l.bf16 %v205
        %v225 = vunpack.c.h.bf16 %v205
        %v226 = vunpack.c.l.bf16 %v206
        %v227 = vunpack.c.h.bf16 %v206
        %v228 = vunpack.c.l.bf16 %v207
        %v229 = vunpack.c.h.bf16 %v207
        %v230 = vunpack.c.l.bf16 %v208
        %v231 = vunpack.c.h.bf16 %v208
        %v232 = vunpack.c.l.bf16 %v209
        %v233 = vunpack.c.h.bf16 %v209
        %v234 = vld [vmem:[#allocation5] ss:$8 sm:$0xf]
        %v235 = vld [vmem:[#allocation5] ss:$8 sm:$0x30]
        %v236 = vor.u32 %v234, %v235
        %v238 = vlaneseq
        %v239 = vshrl.u32 %v238, 7
        %v240 = vsub.s32 0, %v239
        %v241 = vrot.slane %v236, %v240
        %v242 = vlaneseq
        %v243 = vshrl.u32 %v242, 7
        %v244 = vsub.s32 1, %v243
        %v245 = vrot.slane %v236, %v244
        %v246 = vlaneseq
        %v247 = vshrl.u32 %v246, 7
        %v248 = vsub.s32 2, %v247
        %v249 = vrot.slane %v236, %v248
        %v250 = vlaneseq
        %v251 = vshrl.u32 %v250, 7
        %v252 = vsub.s32 3, %v251
        %v253 = vrot.slane %v236, %v252
        %v254 = vlaneseq
        %v255 = vshrl.u32 %v254, 7
        %v256 = vsub.s32 4, %v255
        %v257 = vrot.slane %v236, %v256
        %v258 = vlaneseq
        %v259 = vshrl.u32 %v258, 7
        %v260 = vsub.s32 5, %v259
        %v261 = vrot.slane %v236, %v260
        %v268 = vmul.f32 %v210, %v241
        %v269 = vmul.f32 %v211, %v245
        %v270 = vmul.f32 %v212, %v249
        %v271 = vmul.f32 %v213, %v253
        %v272 = vmul.f32 %v214, %v257
        %v273 = vmul.f32 %v215, %v261
        %v274 = vmul.f32 %v216, %v241
        %v275 = vmul.f32 %v217, %v245
        %v276 = vmul.f32 %v218, %v249
        %v277 = vmul.f32 %v219, %v253
        %v278 = vmul.f32 %v220, %v257
        %v279 = vmul.f32 %v221, %v261
        %v280 = vmul.f32 %v222, %v241
        %v281 = vmul.f32 %v223, %v245
        %v282 = vmul.f32 %v224, %v249
        %v283 = vmul.f32 %v225, %v253
        %v284 = vmul.f32 %v226, %v257
        %v285 = vmul.f32 %v227, %v261
        %v286 = vmul.f32 %v228, %v241
        %v287 = vmul.f32 %v229, %v245
        %v288 = vmul.f32 %v230, %v249
        %v289 = vmul.f32 %v231, %v253
        %v290 = vmul.f32 %v232, %v257
        %v291 = vmul.f32 %v233, %v261
        %s292 = scalar_lea.vmem %s171, 96 [#allocation2]
        %v293 = vld [vmem:[%s292] sm:$0xff]
        %v294 = vld [vmem:[%s292 + $0x8] sm:$0xff]
        %v295 = vld [vmem:[%s292 + $0x10] sm:$0xff]
        %v296 = vld [vmem:[%s292 + $0x18] sm:$0xff]
        %v297 = vld [vmem:[%s292 + $0x20] sm:$0xff]
        %v298 = vld [vmem:[%s292 + $0x28] sm:$0xff]
        %v299 = vld [vmem:[%s292 + $0x30] sm:$0xff]
        %v300 = vld [vmem:[%s292 + $0x38] sm:$0xff]
        %v301 = vld [vmem:[%s292 + $0x40] sm:$0xff]
        %v302 = vld [vmem:[%s292 + $0x48] sm:$0xff]
        %v303 = vld [vmem:[%s292 + $0x50] sm:$0xff]
        %v304 = vld [vmem:[%s292 + $0x58] sm:$0xff]
        %v305 = vunpack.c.l.bf16 %v293
        %v306 = vunpack.c.h.bf16 %v293
        %v307 = vunpack.c.l.bf16 %v294
        %v308 = vunpack.c.h.bf16 %v294
        %v309 = vunpack.c.l.bf16 %v295
        %v310 = vunpack.c.h.bf16 %v295
        %v311 = vunpack.c.l.bf16 %v296
        %v312 = vunpack.c.h.bf16 %v296
        %v313 = vunpack.c.l.bf16 %v297
        %v314 = vunpack.c.h.bf16 %v297
        %v315 = vunpack.c.l.bf16 %v298
        %v316 = vunpack.c.h.bf16 %v298
        %v317 = vunpack.c.l.bf16 %v299
        %v318 = vunpack.c.h.bf16 %v299
        %v319 = vunpack.c.l.bf16 %v300
        %v320 = vunpack.c.h.bf16 %v300
        %v321 = vunpack.c.l.bf16 %v301
        %v322 = vunpack.c.h.bf16 %v301
        %v323 = vunpack.c.l.bf16 %v302
        %v324 = vunpack.c.h.bf16 %v302
        %v325 = vunpack.c.l.bf16 %v303
        %v326 = vunpack.c.h.bf16 %v303
        %v327 = vunpack.c.l.bf16 %v304
        %v328 = vunpack.c.h.bf16 %v304
        %s329 = scalar_lea.vmem [#allocation5], 1
        %v330 = vld [vmem:[%s329] ss:$8 sm:$0xf]
        %v331 = vld [vmem:[%s329] ss:$8 sm:$0x30]
        %v332 = vor.u32 %v330, %v331
        %v334 = vlaneseq
        %v335 = vshrl.u32 %v334, 7
        %v336 = vsub.s32 0, %v335
        %v337 = vrot.slane %v332, %v336
        %v338 = vlaneseq
        %v339 = vshrl.u32 %v338, 7
        %v340 = vsub.s32 1, %v339
        %v341 = vrot.slane %v332, %v340
        %v342 = vlaneseq
        %v343 = vshrl.u32 %v342, 7
        %v344 = vsub.s32 2, %v343
        %v345 = vrot.slane %v332, %v344
        %v346 = vlaneseq
        %v347 = vshrl.u32 %v346, 7
        %v348 = vsub.s32 3, %v347
        %v349 = vrot.slane %v332, %v348
        %v350 = vlaneseq
        %v351 = vshrl.u32 %v350, 7
        %v352 = vsub.s32 4, %v351
        %v353 = vrot.slane %v332, %v352
        %v354 = vlaneseq
        %v355 = vshrl.u32 %v354, 7
        %v356 = vsub.s32 5, %v355
        %v357 = vrot.slane %v332, %v356
        %v364 = vmul.f32 %v305, %v337
        %v365 = vmul.f32 %v306, %v341
        %v366 = vmul.f32 %v307, %v345
        %v367 = vmul.f32 %v308, %v349
        %v368 = vmul.f32 %v309, %v353
        %v369 = vmul.f32 %v310, %v357
        %v370 = vmul.f32 %v311, %v337
        %v371 = vmul.f32 %v312, %v341
        %v372 = vmul.f32 %v313, %v345
        %v373 = vmul.f32 %v314, %v349
        %v374 = vmul.f32 %v315, %v353
        %v375 = vmul.f32 %v316, %v357
        %v376 = vmul.f32 %v317, %v337
        %v377 = vmul.f32 %v318, %v341
        %v378 = vmul.f32 %v319, %v345
        %v379 = vmul.f32 %v320, %v349
        %v380 = vmul.f32 %v321, %v353
        %v381 = vmul.f32 %v322, %v357
        %v382 = vmul.f32 %v323, %v337
        %v383 = vmul.f32 %v324, %v341
        %v384 = vmul.f32 %v325, %v345
        %v385 = vmul.f32 %v326, %v349
        %v386 = vmul.f32 %v327, %v353
        %v387 = vmul.f32 %v328, %v357
        %v388 = vadd.f32 %v268, %v364
        %v389 = vadd.f32 %v269, %v365
        %v390 = vadd.f32 %v270, %v366
        %v391 = vadd.f32 %v271, %v367
        %v392 = vadd.f32 %v272, %v368
        %v393 = vadd.f32 %v273, %v369
        %v394 = vadd.f32 %v274, %v370
        %v395 = vadd.f32 %v275, %v371
        %v396 = vadd.f32 %v276, %v372
        %v397 = vadd.f32 %v277, %v373
        %v398 = vadd.f32 %v278, %v374
        %v399 = vadd.f32 %v279, %v375
        %v400 = vadd.f32 %v280, %v376
        %v401 = vadd.f32 %v281, %v377
        %v402 = vadd.f32 %v282, %v378
        %v403 = vadd.f32 %v283, %v379
        %v404 = vadd.f32 %v284, %v380
        %v405 = vadd.f32 %v285, %v381
        %v406 = vadd.f32 %v286, %v382
        %v407 = vadd.f32 %v287, %v383
        %v408 = vadd.f32 %v288, %v384
        %v409 = vadd.f32 %v289, %v385
        %v410 = vadd.f32 %v290, %v386
        %v411 = vadd.f32 %v291, %v387
        %s412 = scalar_lea.vmem %s171, 192 [#allocation2]
        %v413 = vld [vmem:[%s412] sm:$0xff]
        %v414 = vld [vmem:[%s412 + $0x8] sm:$0xff]
        %v415 = vld [vmem:[%s412 + $0x10] sm:$0xff]
        %v416 = vld [vmem:[%s412 + $0x18] sm:$0xff]
        %v417 = vld [vmem:[%s412 + $0x20] sm:$0xff]
        %v418 = vld [vmem:[%s412 + $0x28] sm:$0xff]
        %v419 = vld [vmem:[%s412 + $0x30] sm:$0xff]
        %v420 = vld [vmem:[%s412 + $0x38] sm:$0xff]
        %v421 = vld [vmem:[%s412 + $0x40] sm:$0xff]
        %v422 = vld [vmem:[%s412 + $0x48] sm:$0xff]
        %v423 = vld [vmem:[%s412 + $0x50] sm:$0xff]
        %v424 = vld [vmem:[%s412 + $0x58] sm:$0xff]
        %v425 = vunpack.c.l.bf16 %v413
        %v426 = vunpack.c.h.bf16 %v413
        %v427 = vunpack.c.l.bf16 %v414
        %v428 = vunpack.c.h.bf16 %v414
        %v429 = vunpack.c.l.bf16 %v415
        %v430 = vunpack.c.h.bf16 %v415
        %v431 = vunpack.c.l.bf16 %v416
        %v432 = vunpack.c.h.bf16 %v416
        %v433 = vunpack.c.l.bf16 %v417
        %v434 = vunpack.c.h.bf16 %v417
        %v435 = vunpack.c.l.bf16 %v418
        %v436 = vunpack.c.h.bf16 %v418
        %v437 = vunpack.c.l.bf16 %v419
        %v438 = vunpack.c.h.bf16 %v419
        %v439 = vunpack.c.l.bf16 %v420
        %v440 = vunpack.c.h.bf16 %v420
        %v441 = vunpack.c.l.bf16 %v421
        %v442 = vunpack.c.h.bf16 %v421
        %v443 = vunpack.c.l.bf16 %v422
        %v444 = vunpack.c.h.bf16 %v422
        %v445 = vunpack.c.l.bf16 %v423
        %v446 = vunpack.c.h.bf16 %v423
        %v447 = vunpack.c.l.bf16 %v424
        %v448 = vunpack.c.h.bf16 %v424
        %s449 = scalar_lea.vmem [#allocation5], 2
        %v450 = vld [vmem:[%s449] ss:$8 sm:$0xf]
        %v451 = vld [vmem:[%s449] ss:$8 sm:$0x30]
        %v452 = vor.u32 %v450, %v451
        %v454 = vlaneseq
        %v455 = vshrl.u32 %v454, 7
        %v456 = vsub.s32 0, %v455
        %v457 = vrot.slane %v452, %v456
        %v458 = vlaneseq
        %v459 = vshrl.u32 %v458, 7
        %v460 = vsub.s32 1, %v459
        %v461 = vrot.slane %v452, %v460
        %v462 = vlaneseq
        %v463 = vshrl.u32 %v462, 7
        %v464 = vsub.s32 2, %v463
        %v465 = vrot.slane %v452, %v464
        %v466 = vlaneseq
        %v467 = vshrl.u32 %v466, 7
        %v468 = vsub.s32 3, %v467
        %v469 = vrot.slane %v452, %v468
        %v470 = vlaneseq
        %v471 = vshrl.u32 %v470, 7
        %v472 = vsub.s32 4, %v471
        %v473 = vrot.slane %v452, %v472
        %v474 = vlaneseq
        %v475 = vshrl.u32 %v474, 7
        %v476 = vsub.s32 5, %v475
        %v477 = vrot.slane %v452, %v476
        %v484 = vmul.f32 %v425, %v457
        %v485 = vmul.f32 %v426, %v461
        %v486 = vmul.f32 %v427, %v465
        %v487 = vmul.f32 %v428, %v469
        %v488 = vmul.f32 %v429, %v473
        %v489 = vmul.f32 %v430, %v477
        %v490 = vmul.f32 %v431, %v457
        %v491 = vmul.f32 %v432, %v461
        %v492 = vmul.f32 %v433, %v465
        %v493 = vmul.f32 %v434, %v469
        %v494 = vmul.f32 %v435, %v473
        %v495 = vmul.f32 %v436, %v477
        %v496 = vmul.f32 %v437, %v457
        %v497 = vmul.f32 %v438, %v461
        %v498 = vmul.f32 %v439, %v465
        %v499 = vmul.f32 %v440, %v469
        %v500 = vmul.f32 %v441, %v473
        %v501 = vmul.f32 %v442, %v477
        %v502 = vmul.f32 %v443, %v457
        %v503 = vmul.f32 %v444, %v461
        %v504 = vmul.f32 %v445, %v465
        %v505 = vmul.f32 %v446, %v469
        %v506 = vmul.f32 %v447, %v473
        %v507 = vmul.f32 %v448, %v477
        %v508 = vadd.f32 %v388, %v484
        %v509 = vadd.f32 %v389, %v485
        %v510 = vadd.f32 %v390, %v486
        %v511 = vadd.f32 %v391, %v487
        %v512 = vadd.f32 %v392, %v488
        %v513 = vadd.f32 %v393, %v489
        %v514 = vadd.f32 %v394, %v490
        %v515 = vadd.f32 %v395, %v491
        %v516 = vadd.f32 %v396, %v492
        %v517 = vadd.f32 %v397, %v493
        %v518 = vadd.f32 %v398, %v494
        %v519 = vadd.f32 %v399, %v495
        %v520 = vadd.f32 %v400, %v496
        %v521 = vadd.f32 %v401, %v497
        %v522 = vadd.f32 %v402, %v498
        %v523 = vadd.f32 %v403, %v499
        %v524 = vadd.f32 %v404, %v500
        %v525 = vadd.f32 %v405, %v501
        %v526 = vadd.f32 %v406, %v502
        %v527 = vadd.f32 %v407, %v503
        %v528 = vadd.f32 %v408, %v504
        %v529 = vadd.f32 %v409, %v505
        %v530 = vadd.f32 %v410, %v506
        %v531 = vadd.f32 %v411, %v507
        %s532 = scalar_lea.vmem %s171, 288 [#allocation2]
        %v533 = vld [vmem:[%s532] sm:$0xff]
        %v534 = vld [vmem:[%s532 + $0x8] sm:$0xff]
        %v535 = vld [vmem:[%s532 + $0x10] sm:$0xff]
        %v536 = vld [vmem:[%s532 + $0x18] sm:$0xff]
        %v537 = vld [vmem:[%s532 + $0x20] sm:$0xff]
        %v538 = vld [vmem:[%s532 + $0x28] sm:$0xff]
        %v539 = vld [vmem:[%s532 + $0x30] sm:$0xff]
        %v540 = vld [vmem:[%s532 + $0x38] sm:$0xff]
        %v541 = vld [vmem:[%s532 + $0x40] sm:$0xff]
        %v542 = vld [vmem:[%s532 + $0x48] sm:$0xff]
        %v543 = vld [vmem:[%s532 + $0x50] sm:$0xff]
        %v544 = vld [vmem:[%s532 + $0x58] sm:$0xff]
        %v545 = vunpack.c.l.bf16 %v533
        %v546 = vunpack.c.h.bf16 %v533
        %v547 = vunpack.c.l.bf16 %v534
        %v548 = vunpack.c.h.bf16 %v534
        %v549 = vunpack.c.l.bf16 %v535
        %v550 = vunpack.c.h.bf16 %v535
        %v551 = vunpack.c.l.bf16 %v536
        %v552 = vunpack.c.h.bf16 %v536
        %v553 = vunpack.c.l.bf16 %v537
        %v554 = vunpack.c.h.bf16 %v537
        %v555 = vunpack.c.l.bf16 %v538
        %v556 = vunpack.c.h.bf16 %v538
        %v557 = vunpack.c.l.bf16 %v539
        %v558 = vunpack.c.h.bf16 %v539
        %v559 = vunpack.c.l.bf16 %v540
        %v560 = vunpack.c.h.bf16 %v540
        %v561 = vunpack.c.l.bf16 %v541
        %v562 = vunpack.c.h.bf16 %v541
        %v563 = vunpack.c.l.bf16 %v542
        %v564 = vunpack.c.h.bf16 %v542
        %v565 = vunpack.c.l.bf16 %v543
        %v566 = vunpack.c.h.bf16 %v543
        %v567 = vunpack.c.l.bf16 %v544
        %v568 = vunpack.c.h.bf16 %v544
        %s569 = scalar_lea.vmem [#allocation5], 3
        %v570 = vld [vmem:[%s569] ss:$8 sm:$0xf]
        %v571 = vld [vmem:[%s569] ss:$8 sm:$0x30]
        %v572 = vor.u32 %v570, %v571
        %v574 = vlaneseq
        %v575 = vshrl.u32 %v574, 7
        %v576 = vsub.s32 0, %v575
        %v577 = vrot.slane %v572, %v576
        %v578 = vlaneseq
        %v579 = vshrl.u32 %v578, 7
        %v580 = vsub.s32 1, %v579
        %v581 = vrot.slane %v572, %v580
        %v582 = vlaneseq
        %v583 = vshrl.u32 %v582, 7
        %v584 = vsub.s32 2, %v583
        %v585 = vrot.slane %v572, %v584
        %v586 = vlaneseq
        %v587 = vshrl.u32 %v586, 7
        %v588 = vsub.s32 3, %v587
        %v589 = vrot.slane %v572, %v588
        %v590 = vlaneseq
        %v591 = vshrl.u32 %v590, 7
        %v592 = vsub.s32 4, %v591
        %v593 = vrot.slane %v572, %v592
        %v594 = vlaneseq
        %v595 = vshrl.u32 %v594, 7
        %v596 = vsub.s32 5, %v595
        %v597 = vrot.slane %v572, %v596
        %v604 = vmul.f32 %v545, %v577
        %v605 = vmul.f32 %v546, %v581
        %v606 = vmul.f32 %v547, %v585
        %v607 = vmul.f32 %v548, %v589
        %v608 = vmul.f32 %v549, %v593
        %v609 = vmul.f32 %v550, %v597
        %v610 = vmul.f32 %v551, %v577
        %v611 = vmul.f32 %v552, %v581
        %v612 = vmul.f32 %v553, %v585
        %v613 = vmul.f32 %v554, %v589
        %v614 = vmul.f32 %v555, %v593
        %v615 = vmul.f32 %v556, %v597
        %v616 = vmul.f32 %v557, %v577
        %v617 = vmul.f32 %v558, %v581
        %v618 = vmul.f32 %v559, %v585
        %v619 = vmul.f32 %v560, %v589
        %v620 = vmul.f32 %v561, %v593
        %v621 = vmul.f32 %v562, %v597
        %v622 = vmul.f32 %v563, %v577
        %v623 = vmul.f32 %v564, %v581
        %v624 = vmul.f32 %v565, %v585
        %v625 = vmul.f32 %v566, %v589
        %v626 = vmul.f32 %v567, %v593
        %v627 = vmul.f32 %v568, %v597
        %v628 = vadd.f32 %v508, %v604
        %v629 = vadd.f32 %v509, %v605
        %v630 = vadd.f32 %v510, %v606
        %v631 = vadd.f32 %v511, %v607
        %v632 = vadd.f32 %v512, %v608
        %v633 = vadd.f32 %v513, %v609
        %v634 = vadd.f32 %v514, %v610
        %v635 = vadd.f32 %v515, %v611
        %v636 = vadd.f32 %v516, %v612
        %v637 = vadd.f32 %v517, %v613
        %v638 = vadd.f32 %v518, %v614
        %v639 = vadd.f32 %v519, %v615
        %v640 = vadd.f32 %v520, %v616
        %v641 = vadd.f32 %v521, %v617
        %v642 = vadd.f32 %v522, %v618
        %v643 = vadd.f32 %v523, %v619
        %v644 = vadd.f32 %v524, %v620
        %v645 = vadd.f32 %v525, %v621
        %v646 = vadd.f32 %v526, %v622
        %v647 = vadd.f32 %v527, %v623
        %v648 = vadd.f32 %v528, %v624
        %v649 = vadd.f32 %v529, %v625
        %v650 = vadd.f32 %v530, %v626
        %v651 = vadd.f32 %v531, %v627
        %s652 = scalar_lea.vmem %s171, 384 [#allocation2]
        %v653 = vld [vmem:[%s652] sm:$0xff]
        %v654 = vld [vmem:[%s652 + $0x8] sm:$0xff]
        %v655 = vld [vmem:[%s652 + $0x10] sm:$0xff]
        %v656 = vld [vmem:[%s652 + $0x18] sm:$0xff]
        %v657 = vld [vmem:[%s652 + $0x20] sm:$0xff]
        %v658 = vld [vmem:[%s652 + $0x28] sm:$0xff]
        %v659 = vld [vmem:[%s652 + $0x30] sm:$0xff]
        %v660 = vld [vmem:[%s652 + $0x38] sm:$0xff]
        %v661 = vld [vmem:[%s652 + $0x40] sm:$0xff]
        %v662 = vld [vmem:[%s652 + $0x48] sm:$0xff]
        %v663 = vld [vmem:[%s652 + $0x50] sm:$0xff]
        %v664 = vld [vmem:[%s652 + $0x58] sm:$0xff]
        %v665 = vunpack.c.l.bf16 %v653
        %v666 = vunpack.c.h.bf16 %v653
        %v667 = vunpack.c.l.bf16 %v654
        %v668 = vunpack.c.h.bf16 %v654
        %v669 = vunpack.c.l.bf16 %v655
        %v670 = vunpack.c.h.bf16 %v655
        %v671 = vunpack.c.l.bf16 %v656
        %v672 = vunpack.c.h.bf16 %v656
        %v673 = vunpack.c.l.bf16 %v657
        %v674 = vunpack.c.h.bf16 %v657
        %v675 = vunpack.c.l.bf16 %v658
        %v676 = vunpack.c.h.bf16 %v658
        %v677 = vunpack.c.l.bf16 %v659
        %v678 = vunpack.c.h.bf16 %v659
        %v679 = vunpack.c.l.bf16 %v660
        %v680 = vunpack.c.h.bf16 %v660
        %v681 = vunpack.c.l.bf16 %v661
        %v682 = vunpack.c.h.bf16 %v661
        %v683 = vunpack.c.l.bf16 %v662
        %v684 = vunpack.c.h.bf16 %v662
        %v685 = vunpack.c.l.bf16 %v663
        %v686 = vunpack.c.h.bf16 %v663
        %v687 = vunpack.c.l.bf16 %v664
        %v688 = vunpack.c.h.bf16 %v664
        %s689 = scalar_lea.vmem [#allocation5], 4
        %v690 = vld [vmem:[%s689] ss:$8 sm:$0xf]
        %v691 = vld [vmem:[%s689] ss:$8 sm:$0x30]
        %v692 = vor.u32 %v690, %v691
        %v694 = vlaneseq
        %v695 = vshrl.u32 %v694, 7
        %v696 = vsub.s32 0, %v695
        %v697 = vrot.slane %v692, %v696
        %v698 = vlaneseq
        %v699 = vshrl.u32 %v698, 7
        %v700 = vsub.s32 1, %v699
        %v701 = vrot.slane %v692, %v700
        %v702 = vlaneseq
        %v703 = vshrl.u32 %v702, 7
        %v704 = vsub.s32 2, %v703
        %v705 = vrot.slane %v692, %v704
        %v706 = vlaneseq
        %v707 = vshrl.u32 %v706, 7
        %v708 = vsub.s32 3, %v707
        %v709 = vrot.slane %v692, %v708
        %v710 = vlaneseq
        %v711 = vshrl.u32 %v710, 7
        %v712 = vsub.s32 4, %v711
        %v713 = vrot.slane %v692, %v712
        %v714 = vlaneseq
        %v715 = vshrl.u32 %v714, 7
        %v716 = vsub.s32 5, %v715
        %v717 = vrot.slane %v692, %v716
        %v724 = vmul.f32 %v665, %v697
        %v725 = vmul.f32 %v666, %v701
        %v726 = vmul.f32 %v667, %v705
        %v727 = vmul.f32 %v668, %v709
        %v728 = vmul.f32 %v669, %v713
        %v729 = vmul.f32 %v670, %v717
        %v730 = vmul.f32 %v671, %v697
        %v731 = vmul.f32 %v672, %v701
        %v732 = vmul.f32 %v673, %v705
        %v733 = vmul.f32 %v674, %v709
        %v734 = vmul.f32 %v675, %v713
        %v735 = vmul.f32 %v676, %v717
        %v736 = vmul.f32 %v677, %v697
        %v737 = vmul.f32 %v678, %v701
        %v738 = vmul.f32 %v679, %v705
        %v739 = vmul.f32 %v680, %v709
        %v740 = vmul.f32 %v681, %v713
        %v741 = vmul.f32 %v682, %v717
        %v742 = vmul.f32 %v683, %v697
        %v743 = vmul.f32 %v684, %v701
        %v744 = vmul.f32 %v685, %v705
        %v745 = vmul.f32 %v686, %v709
        %v746 = vmul.f32 %v687, %v713
        %v747 = vmul.f32 %v688, %v717
        %v748 = vadd.f32 %v628, %v724
        %v749 = vadd.f32 %v629, %v725
        %v750 = vadd.f32 %v630, %v726
        %v751 = vadd.f32 %v631, %v727
        %v752 = vadd.f32 %v632, %v728
        %v753 = vadd.f32 %v633, %v729
        %v754 = vadd.f32 %v634, %v730
        %v755 = vadd.f32 %v635, %v731
        %v756 = vadd.f32 %v636, %v732
        %v757 = vadd.f32 %v637, %v733
        %v758 = vadd.f32 %v638, %v734
        %v759 = vadd.f32 %v639, %v735
        %v760 = vadd.f32 %v640, %v736
        %v761 = vadd.f32 %v641, %v737
        %v762 = vadd.f32 %v642, %v738
        %v763 = vadd.f32 %v643, %v739
        %v764 = vadd.f32 %v644, %v740
        %v765 = vadd.f32 %v645, %v741
        %v766 = vadd.f32 %v646, %v742
        %v767 = vadd.f32 %v647, %v743
        %v768 = vadd.f32 %v648, %v744
        %v769 = vadd.f32 %v649, %v745
        %v770 = vadd.f32 %v650, %v746
        %v771 = vadd.f32 %v651, %v747
        %s772 = scalar_lea.vmem %s171, 480 [#allocation2]
        %v773 = vld [vmem:[%s772] sm:$0xff]
        %v774 = vld [vmem:[%s772 + $0x8] sm:$0xff]
        %v775 = vld [vmem:[%s772 + $0x10] sm:$0xff]
        %v776 = vld [vmem:[%s772 + $0x18] sm:$0xff]
        %v777 = vld [vmem:[%s772 + $0x20] sm:$0xff]
        %v778 = vld [vmem:[%s772 + $0x28] sm:$0xff]
        %v779 = vld [vmem:[%s772 + $0x30] sm:$0xff]
        %v780 = vld [vmem:[%s772 + $0x38] sm:$0xff]
        %v781 = vld [vmem:[%s772 + $0x40] sm:$0xff]
        %v782 = vld [vmem:[%s772 + $0x48] sm:$0xff]
        %v783 = vld [vmem:[%s772 + $0x50] sm:$0xff]
        %v784 = vld [vmem:[%s772 + $0x58] sm:$0xff]
        %v785 = vunpack.c.l.bf16 %v773
        %v786 = vunpack.c.h.bf16 %v773
        %v787 = vunpack.c.l.bf16 %v774
        %v788 = vunpack.c.h.bf16 %v774
        %v789 = vunpack.c.l.bf16 %v775
        %v790 = vunpack.c.h.bf16 %v775
        %v791 = vunpack.c.l.bf16 %v776
        %v792 = vunpack.c.h.bf16 %v776
        %v793 = vunpack.c.l.bf16 %v777
        %v794 = vunpack.c.h.bf16 %v777
        %v795 = vunpack.c.l.bf16 %v778
        %v796 = vunpack.c.h.bf16 %v778
        %v797 = vunpack.c.l.bf16 %v779
        %v798 = vunpack.c.h.bf16 %v779
        %v799 = vunpack.c.l.bf16 %v780
        %v800 = vunpack.c.h.bf16 %v780
        %v801 = vunpack.c.l.bf16 %v781
        %v802 = vunpack.c.h.bf16 %v781
        %v803 = vunpack.c.l.bf16 %v782
        %v804 = vunpack.c.h.bf16 %v782
        %v805 = vunpack.c.l.bf16 %v783
        %v806 = vunpack.c.h.bf16 %v783
        %v807 = vunpack.c.l.bf16 %v784
        %v808 = vunpack.c.h.bf16 %v784
        %s809 = scalar_lea.vmem [#allocation5], 5
        %v810 = vld [vmem:[%s809] ss:$8 sm:$0xf]
        %v811 = vld [vmem:[%s809] ss:$8 sm:$0x30]
        %v812 = vor.u32 %v810, %v811
        %v814 = vlaneseq
        %v815 = vshrl.u32 %v814, 7
        %v816 = vsub.s32 0, %v815
        %v817 = vrot.slane %v812, %v816
        %v818 = vlaneseq
        %v819 = vshrl.u32 %v818, 7
        %v820 = vsub.s32 1, %v819
        %v821 = vrot.slane %v812, %v820
        %v822 = vlaneseq
        %v823 = vshrl.u32 %v822, 7
        %v824 = vsub.s32 2, %v823
        %v825 = vrot.slane %v812, %v824
        %v826 = vlaneseq
        %v827 = vshrl.u32 %v826, 7
        %v828 = vsub.s32 3, %v827
        %v829 = vrot.slane %v812, %v828
        %v830 = vlaneseq
        %v831 = vshrl.u32 %v830, 7
        %v832 = vsub.s32 4, %v831
        %v833 = vrot.slane %v812, %v832
        %v834 = vlaneseq
        %v835 = vshrl.u32 %v834, 7
        %v836 = vsub.s32 5, %v835
        %v837 = vrot.slane %v812, %v836
        %v844 = vmul.f32 %v785, %v817
        %v845 = vmul.f32 %v786, %v821
        %v846 = vmul.f32 %v787, %v825
        %v847 = vmul.f32 %v788, %v829
        %v848 = vmul.f32 %v789, %v833
        %v849 = vmul.f32 %v790, %v837
        %v850 = vmul.f32 %v791, %v817
        %v851 = vmul.f32 %v792, %v821
        %v852 = vmul.f32 %v793, %v825
        %v853 = vmul.f32 %v794, %v829
        %v854 = vmul.f32 %v795, %v833
        %v855 = vmul.f32 %v796, %v837
        %v856 = vmul.f32 %v797, %v817
        %v857 = vmul.f32 %v798, %v821
        %v858 = vmul.f32 %v799, %v825
        %v859 = vmul.f32 %v800, %v829
        %v860 = vmul.f32 %v801, %v833
        %v861 = vmul.f32 %v802, %v837
        %v862 = vmul.f32 %v803, %v817
        %v863 = vmul.f32 %v804, %v821
        %v864 = vmul.f32 %v805, %v825
        %v865 = vmul.f32 %v806, %v829
        %v866 = vmul.f32 %v807, %v833
        %v867 = vmul.f32 %v808, %v837
        %v868 = vadd.f32 %v748, %v844
        %v869 = vadd.f32 %v749, %v845
        %v870 = vadd.f32 %v750, %v846
        %v871 = vadd.f32 %v751, %v847
        %v872 = vadd.f32 %v752, %v848
        %v873 = vadd.f32 %v753, %v849
        %v874 = vadd.f32 %v754, %v850
        %v875 = vadd.f32 %v755, %v851
        %v876 = vadd.f32 %v756, %v852
        %v877 = vadd.f32 %v757, %v853
        %v878 = vadd.f32 %v758, %v854
        %v879 = vadd.f32 %v759, %v855
        %v880 = vadd.f32 %v760, %v856
        %v881 = vadd.f32 %v761, %v857
        %v882 = vadd.f32 %v762, %v858
        %v883 = vadd.f32 %v763, %v859
        %v884 = vadd.f32 %v764, %v860
        %v885 = vadd.f32 %v765, %v861
        %v886 = vadd.f32 %v766, %v862
        %v887 = vadd.f32 %v767, %v863
        %v888 = vadd.f32 %v768, %v864
        %v889 = vadd.f32 %v769, %v865
        %v890 = vadd.f32 %v770, %v866
        %v891 = vadd.f32 %v771, %v867
        %s892 = scalar_lea.vmem %s171, 576 [#allocation2]
        %v893 = vld [vmem:[%s892] sm:$0xff]
        %v894 = vld [vmem:[%s892 + $0x8] sm:$0xff]
        %v895 = vld [vmem:[%s892 + $0x10] sm:$0xff]
        %v896 = vld [vmem:[%s892 + $0x18] sm:$0xff]
        %v897 = vld [vmem:[%s892 + $0x20] sm:$0xff]
        %v898 = vld [vmem:[%s892 + $0x28] sm:$0xff]
        %v899 = vld [vmem:[%s892 + $0x30] sm:$0xff]
        %v900 = vld [vmem:[%s892 + $0x38] sm:$0xff]
        %v901 = vld [vmem:[%s892 + $0x40] sm:$0xff]
        %v902 = vld [vmem:[%s892 + $0x48] sm:$0xff]
        %v903 = vld [vmem:[%s892 + $0x50] sm:$0xff]
        %v904 = vld [vmem:[%s892 + $0x58] sm:$0xff]
        %v905 = vunpack.c.l.bf16 %v893
        %v906 = vunpack.c.h.bf16 %v893
        %v907 = vunpack.c.l.bf16 %v894
        %v908 = vunpack.c.h.bf16 %v894
        %v909 = vunpack.c.l.bf16 %v895
        %v910 = vunpack.c.h.bf16 %v895
        %v911 = vunpack.c.l.bf16 %v896
        %v912 = vunpack.c.h.bf16 %v896
        %v913 = vunpack.c.l.bf16 %v897
        %v914 = vunpack.c.h.bf16 %v897
        %v915 = vunpack.c.l.bf16 %v898
        %v916 = vunpack.c.h.bf16 %v898
        %v917 = vunpack.c.l.bf16 %v899
        %v918 = vunpack.c.h.bf16 %v899
        %v919 = vunpack.c.l.bf16 %v900
        %v920 = vunpack.c.h.bf16 %v900
        %v921 = vunpack.c.l.bf16 %v901
        %v922 = vunpack.c.h.bf16 %v901
        %v923 = vunpack.c.l.bf16 %v902
        %v924 = vunpack.c.h.bf16 %v902
        %v925 = vunpack.c.l.bf16 %v903
        %v926 = vunpack.c.h.bf16 %v903
        %v927 = vunpack.c.l.bf16 %v904
        %v928 = vunpack.c.h.bf16 %v904
        %s929 = scalar_lea.vmem [#allocation5], 6
        %v930 = vld [vmem:[%s929] ss:$8 sm:$0xf]
        %v931 = vld [vmem:[%s929] ss:$8 sm:$0x30]
        %v932 = vor.u32 %v930, %v931
        %v934 = vlaneseq
        %v935 = vshrl.u32 %v934, 7
        %v936 = vsub.s32 0, %v935
        %v937 = vrot.slane %v932, %v936
        %v938 = vlaneseq
        %v939 = vshrl.u32 %v938, 7
        %v940 = vsub.s32 1, %v939
        %v941 = vrot.slane %v932, %v940
        %v942 = vlaneseq
        %v943 = vshrl.u32 %v942, 7
        %v944 = vsub.s32 2, %v943
        %v945 = vrot.slane %v932, %v944
        %v946 = vlaneseq
        %v947 = vshrl.u32 %v946, 7
        %v948 = vsub.s32 3, %v947
        %v949 = vrot.slane %v932, %v948
        %v950 = vlaneseq
        %v951 = vshrl.u32 %v950, 7
        %v952 = vsub.s32 4, %v951
        %v953 = vrot.slane %v932, %v952
        %v954 = vlaneseq
        %v955 = vshrl.u32 %v954, 7
        %v956 = vsub.s32 5, %v955
        %v957 = vrot.slane %v932, %v956
        %v964 = vmul.f32 %v905, %v937
        %v965 = vmul.f32 %v906, %v941
        %v966 = vmul.f32 %v907, %v945
        %v967 = vmul.f32 %v908, %v949
        %v968 = vmul.f32 %v909, %v953
        %v969 = vmul.f32 %v910, %v957
        %v970 = vmul.f32 %v911, %v937
        %v971 = vmul.f32 %v912, %v941
        %v972 = vmul.f32 %v913, %v945
        %v973 = vmul.f32 %v914, %v949
        %v974 = vmul.f32 %v915, %v953
        %v975 = vmul.f32 %v916, %v957
        %v976 = vmul.f32 %v917, %v937
        %v977 = vmul.f32 %v918, %v941
        %v978 = vmul.f32 %v919, %v945
        %v979 = vmul.f32 %v920, %v949
        %v980 = vmul.f32 %v921, %v953
        %v981 = vmul.f32 %v922, %v957
        %v982 = vmul.f32 %v923, %v937
        %v983 = vmul.f32 %v924, %v941
        %v984 = vmul.f32 %v925, %v945
        %v985 = vmul.f32 %v926, %v949
        %v986 = vmul.f32 %v927, %v953
        %v987 = vmul.f32 %v928, %v957
        %v988 = vadd.f32 %v868, %v964
        %v989 = vadd.f32 %v869, %v965
        %v990 = vadd.f32 %v870, %v966
        %v991 = vadd.f32 %v871, %v967
        %v992 = vadd.f32 %v872, %v968
        %v993 = vadd.f32 %v873, %v969
        %v994 = vadd.f32 %v874, %v970
        %v995 = vadd.f32 %v875, %v971
        %v996 = vadd.f32 %v876, %v972
        %v997 = vadd.f32 %v877, %v973
        %v998 = vadd.f32 %v878, %v974
        %v999 = vadd.f32 %v879, %v975
        %v1000 = vadd.f32 %v880, %v976
        %v1001 = vadd.f32 %v881, %v977
        %v1002 = vadd.f32 %v882, %v978
        %v1003 = vadd.f32 %v883, %v979
        %v1004 = vadd.f32 %v884, %v980
        %v1005 = vadd.f32 %v885, %v981
        %v1006 = vadd.f32 %v886, %v982
        %v1007 = vadd.f32 %v887, %v983
        %v1008 = vadd.f32 %v888, %v984
        %v1009 = vadd.f32 %v889, %v985
        %v1010 = vadd.f32 %v890, %v986
        %v1011 = vadd.f32 %v891, %v987
        %s1012 = scalar_lea.vmem %s171, 672 [#allocation2]
        %v1013 = vld [vmem:[%s1012] sm:$0xff]
        %v1014 = vld [vmem:[%s1012 + $0x8] sm:$0xff]
        %v1015 = vld [vmem:[%s1012 + $0x10] sm:$0xff]
        %v1016 = vld [vmem:[%s1012 + $0x18] sm:$0xff]
        %v1017 = vld [vmem:[%s1012 + $0x20] sm:$0xff]
        %v1018 = vld [vmem:[%s1012 + $0x28] sm:$0xff]
        %v1019 = vld [vmem:[%s1012 + $0x30] sm:$0xff]
        %v1020 = vld [vmem:[%s1012 + $0x38] sm:$0xff]
        %v1021 = vld [vmem:[%s1012 + $0x40] sm:$0xff]
        %v1022 = vld [vmem:[%s1012 + $0x48] sm:$0xff]
        %v1023 = vld [vmem:[%s1012 + $0x50] sm:$0xff]
        %v1024 = vld [vmem:[%s1012 + $0x58] sm:$0xff]
        %v1025 = vunpack.c.l.bf16 %v1013
        %v1026 = vunpack.c.h.bf16 %v1013
        %v1027 = vunpack.c.l.bf16 %v1014
        %v1028 = vunpack.c.h.bf16 %v1014
        %v1029 = vunpack.c.l.bf16 %v1015
        %v1030 = vunpack.c.h.bf16 %v1015
        %v1031 = vunpack.c.l.bf16 %v1016
        %v1032 = vunpack.c.h.bf16 %v1016
        %v1033 = vunpack.c.l.bf16 %v1017
        %v1034 = vunpack.c.h.bf16 %v1017
        %v1035 = vunpack.c.l.bf16 %v1018
        %v1036 = vunpack.c.h.bf16 %v1018
        %v1037 = vunpack.c.l.bf16 %v1019
        %v1038 = vunpack.c.h.bf16 %v1019
        %v1039 = vunpack.c.l.bf16 %v1020
        %v1040 = vunpack.c.h.bf16 %v1020
        %v1041 = vunpack.c.l.bf16 %v1021
        %v1042 = vunpack.c.h.bf16 %v1021
        %v1043 = vunpack.c.l.bf16 %v1022
        %v1044 = vunpack.c.h.bf16 %v1022
        %v1045 = vunpack.c.l.bf16 %v1023
        %v1046 = vunpack.c.h.bf16 %v1023
        %v1047 = vunpack.c.l.bf16 %v1024
        %v1048 = vunpack.c.h.bf16 %v1024
        %s1049 = scalar_lea.vmem [#allocation5], 7
        %v1050 = vld [vmem:[%s1049] ss:$8 sm:$0xf]
        %v1051 = vld [vmem:[%s1049] ss:$8 sm:$0x30]
        %v1052 = vor.u32 %v1050, %v1051
        %v1054 = vlaneseq
        %v1055 = vshrl.u32 %v1054, 7
        %v1056 = vsub.s32 0, %v1055
        %v1057 = vrot.slane %v1052, %v1056
        %v1058 = vlaneseq
        %v1059 = vshrl.u32 %v1058, 7
        %v1060 = vsub.s32 1, %v1059
        %v1061 = vrot.slane %v1052, %v1060
        %v1062 = vlaneseq
        %v1063 = vshrl.u32 %v1062, 7
        %v1064 = vsub.s32 2, %v1063
        %v1065 = vrot.slane %v1052, %v1064
        %v1066 = vlaneseq
        %v1067 = vshrl.u32 %v1066, 7
        %v1068 = vsub.s32 3, %v1067
        %v1069 = vrot.slane %v1052, %v1068
        %v1070 = vlaneseq
        %v1071 = vshrl.u32 %v1070, 7
        %v1072 = vsub.s32 4, %v1071
        %v1073 = vrot.slane %v1052, %v1072
        %v1074 = vlaneseq
        %v1075 = vshrl.u32 %v1074, 7
        %v1076 = vsub.s32 5, %v1075
        %v1077 = vrot.slane %v1052, %v1076
        %v1084 = vmul.f32 %v1025, %v1057
        %v1085 = vmul.f32 %v1026, %v1061
        %v1086 = vmul.f32 %v1027, %v1065
        %v1087 = vmul.f32 %v1028, %v1069
        %v1088 = vmul.f32 %v1029, %v1073
        %v1089 = vmul.f32 %v1030, %v1077
        %v1090 = vmul.f32 %v1031, %v1057
        %v1091 = vmul.f32 %v1032, %v1061
        %v1092 = vmul.f32 %v1033, %v1065
        %v1093 = vmul.f32 %v1034, %v1069
        %v1094 = vmul.f32 %v1035, %v1073
        %v1095 = vmul.f32 %v1036, %v1077
        %v1096 = vmul.f32 %v1037, %v1057
        %v1097 = vmul.f32 %v1038, %v1061
        %v1098 = vmul.f32 %v1039, %v1065
        %v1099 = vmul.f32 %v1040, %v1069
        %v1100 = vmul.f32 %v1041, %v1073
        %v1101 = vmul.f32 %v1042, %v1077
        %v1102 = vmul.f32 %v1043, %v1057
        %v1103 = vmul.f32 %v1044, %v1061
        %v1104 = vmul.f32 %v1045, %v1065
        %v1105 = vmul.f32 %v1046, %v1069
        %v1106 = vmul.f32 %v1047, %v1073
        %v1107 = vmul.f32 %v1048, %v1077
        %v1108 = vadd.f32 %v988, %v1084
        %v1109 = vadd.f32 %v989, %v1085
        %v1110 = vadd.f32 %v990, %v1086
        %v1111 = vadd.f32 %v991, %v1087
        %v1112 = vadd.f32 %v992, %v1088
        %v1113 = vadd.f32 %v993, %v1089
        %v1114 = vadd.f32 %v994, %v1090
        %v1115 = vadd.f32 %v995, %v1091
        %v1116 = vadd.f32 %v996, %v1092
        %v1117 = vadd.f32 %v997, %v1093
        %v1118 = vadd.f32 %v998, %v1094
        %v1119 = vadd.f32 %v999, %v1095
        %v1120 = vadd.f32 %v1000, %v1096
        %v1121 = vadd.f32 %v1001, %v1097
        %v1122 = vadd.f32 %v1002, %v1098
        %v1123 = vadd.f32 %v1003, %v1099
        %v1124 = vadd.f32 %v1004, %v1100
        %v1125 = vadd.f32 %v1005, %v1101
        %v1126 = vadd.f32 %v1006, %v1102
        %v1127 = vadd.f32 %v1007, %v1103
        %v1128 = vadd.f32 %v1008, %v1104
        %v1129 = vadd.f32 %v1009, %v1105
        %v1130 = vadd.f32 %v1010, %v1106
        %v1131 = vadd.f32 %v1011, %v1107
        %s1132 = scalar_lea.vmem %s171, 768 [#allocation2]
        %v1133 = vld [vmem:[%s1132] sm:$0xff]
        %v1134 = vld [vmem:[%s1132 + $0x8] sm:$0xff]
        %v1135 = vld [vmem:[%s1132 + $0x10] sm:$0xff]
        %v1136 = vld [vmem:[%s1132 + $0x18] sm:$0xff]
        %v1137 = vld [vmem:[%s1132 + $0x20] sm:$0xff]
        %v1138 = vld [vmem:[%s1132 + $0x28] sm:$0xff]
        %v1139 = vld [vmem:[%s1132 + $0x30] sm:$0xff]
        %v1140 = vld [vmem:[%s1132 + $0x38] sm:$0xff]
        %v1141 = vld [vmem:[%s1132 + $0x40] sm:$0xff]
        %v1142 = vld [vmem:[%s1132 + $0x48] sm:$0xff]
        %v1143 = vld [vmem:[%s1132 + $0x50] sm:$0xff]
        %v1144 = vld [vmem:[%s1132 + $0x58] sm:$0xff]
        %v1145 = vunpack.c.l.bf16 %v1133
        %v1146 = vunpack.c.h.bf16 %v1133
        %v1147 = vunpack.c.l.bf16 %v1134
        %v1148 = vunpack.c.h.bf16 %v1134
        %v1149 = vunpack.c.l.bf16 %v1135
        %v1150 = vunpack.c.h.bf16 %v1135
        %v1151 = vunpack.c.l.bf16 %v1136
        %v1152 = vunpack.c.h.bf16 %v1136
        %v1153 = vunpack.c.l.bf16 %v1137
        %v1154 = vunpack.c.h.bf16 %v1137
        %v1155 = vunpack.c.l.bf16 %v1138
        %v1156 = vunpack.c.h.bf16 %v1138
        %v1157 = vunpack.c.l.bf16 %v1139
        %v1158 = vunpack.c.h.bf16 %v1139
        %v1159 = vunpack.c.l.bf16 %v1140
        %v1160 = vunpack.c.h.bf16 %v1140
        %v1161 = vunpack.c.l.bf16 %v1141
        %v1162 = vunpack.c.h.bf16 %v1141
        %v1163 = vunpack.c.l.bf16 %v1142
        %v1164 = vunpack.c.h.bf16 %v1142
        %v1165 = vunpack.c.l.bf16 %v1143
        %v1166 = vunpack.c.h.bf16 %v1143
        %v1167 = vunpack.c.l.bf16 %v1144
        %v1168 = vunpack.c.h.bf16 %v1144
        %s1169 = scalar_lea.vmem [#allocation5], 48
        %v1170 = vld [vmem:[%s1169] ss:$8 sm:$0xf]
        %v1171 = vld [vmem:[%s1169] ss:$8 sm:$0x30]
        %v1172 = vor.u32 %v1170, %v1171
        %v1174 = vlaneseq
        %v1175 = vshrl.u32 %v1174, 7
        %v1176 = vsub.s32 0, %v1175
        %v1177 = vrot.slane %v1172, %v1176
        %v1178 = vlaneseq
        %v1179 = vshrl.u32 %v1178, 7
        %v1180 = vsub.s32 1, %v1179
        %v1181 = vrot.slane %v1172, %v1180
        %v1182 = vlaneseq
        %v1183 = vshrl.u32 %v1182, 7
        %v1184 = vsub.s32 2, %v1183
        %v1185 = vrot.slane %v1172, %v1184
        %v1186 = vlaneseq
        %v1187 = vshrl.u32 %v1186, 7
        %v1188 = vsub.s32 3, %v1187
        %v1189 = vrot.slane %v1172, %v1188
        %v1190 = vlaneseq
        %v1191 = vshrl.u32 %v1190, 7
        %v1192 = vsub.s32 4, %v1191
        %v1193 = vrot.slane %v1172, %v1192
        %v1194 = vlaneseq
        %v1195 = vshrl.u32 %v1194, 7
        %v1196 = vsub.s32 5, %v1195
        %v1197 = vrot.slane %v1172, %v1196
        %v1204 = vmul.f32 %v1145, %v1177
        %v1205 = vmul.f32 %v1146, %v1181
        %v1206 = vmul.f32 %v1147, %v1185
        %v1207 = vmul.f32 %v1148, %v1189
        %v1208 = vmul.f32 %v1149, %v1193
        %v1209 = vmul.f32 %v1150, %v1197
        %v1210 = vmul.f32 %v1151, %v1177
        %v1211 = vmul.f32 %v1152, %v1181
        %v1212 = vmul.f32 %v1153, %v1185
        %v1213 = vmul.f32 %v1154, %v1189
        %v1214 = vmul.f32 %v1155, %v1193
        %v1215 = vmul.f32 %v1156, %v1197
        %v1216 = vmul.f32 %v1157, %v1177
        %v1217 = vmul.f32 %v1158, %v1181
        %v1218 = vmul.f32 %v1159, %v1185
        %v1219 = vmul.f32 %v1160, %v1189
        %v1220 = vmul.f32 %v1161, %v1193
        %v1221 = vmul.f32 %v1162, %v1197
        %v1222 = vmul.f32 %v1163, %v1177
        %v1223 = vmul.f32 %v1164, %v1181
        %v1224 = vmul.f32 %v1165, %v1185
        %v1225 = vmul.f32 %v1166, %v1189
        %v1226 = vmul.f32 %v1167, %v1193
        %v1227 = vmul.f32 %v1168, %v1197
        %v1228 = vadd.f32 %v1108, %v1204
        %v1229 = vadd.f32 %v1109, %v1205
        %v1230 = vadd.f32 %v1110, %v1206
        %v1231 = vadd.f32 %v1111, %v1207
        %v1232 = vadd.f32 %v1112, %v1208
        %v1233 = vadd.f32 %v1113, %v1209
        %v1234 = vadd.f32 %v1114, %v1210
        %v1235 = vadd.f32 %v1115, %v1211
        %v1236 = vadd.f32 %v1116, %v1212
        %v1237 = vadd.f32 %v1117, %v1213
        %v1238 = vadd.f32 %v1118, %v1214
        %v1239 = vadd.f32 %v1119, %v1215
        %v1240 = vadd.f32 %v1120, %v1216
        %v1241 = vadd.f32 %v1121, %v1217
        %v1242 = vadd.f32 %v1122, %v1218
        %v1243 = vadd.f32 %v1123, %v1219
        %v1244 = vadd.f32 %v1124, %v1220
        %v1245 = vadd.f32 %v1125, %v1221
        %v1246 = vadd.f32 %v1126, %v1222
        %v1247 = vadd.f32 %v1127, %v1223
        %v1248 = vadd.f32 %v1128, %v1224
        %v1249 = vadd.f32 %v1129, %v1225
        %v1250 = vadd.f32 %v1130, %v1226
        %v1251 = vadd.f32 %v1131, %v1227
        %s1252 = scalar_lea.vmem %s171, 864 [#allocation2]
        %v1253 = vld [vmem:[%s1252] sm:$0xff]
        %v1254 = vld [vmem:[%s1252 + $0x8] sm:$0xff]
        %v1255 = vld [vmem:[%s1252 + $0x10] sm:$0xff]
        %v1256 = vld [vmem:[%s1252 + $0x18] sm:$0xff]
        %v1257 = vld [vmem:[%s1252 + $0x20] sm:$0xff]
        %v1258 = vld [vmem:[%s1252 + $0x28] sm:$0xff]
        %v1259 = vld [vmem:[%s1252 + $0x30] sm:$0xff]
        %v1260 = vld [vmem:[%s1252 + $0x38] sm:$0xff]
        %v1261 = vld [vmem:[%s1252 + $0x40] sm:$0xff]
        %v1262 = vld [vmem:[%s1252 + $0x48] sm:$0xff]
        %v1263 = vld [vmem:[%s1252 + $0x50] sm:$0xff]
        %v1264 = vld [vmem:[%s1252 + $0x58] sm:$0xff]
        %v1265 = vunpack.c.l.bf16 %v1253
        %v1266 = vunpack.c.h.bf16 %v1253
        %v1267 = vunpack.c.l.bf16 %v1254
        %v1268 = vunpack.c.h.bf16 %v1254
        %v1269 = vunpack.c.l.bf16 %v1255
        %v1270 = vunpack.c.h.bf16 %v1255
        %v1271 = vunpack.c.l.bf16 %v1256
        %v1272 = vunpack.c.h.bf16 %v1256
        %v1273 = vunpack.c.l.bf16 %v1257
        %v1274 = vunpack.c.h.bf16 %v1257
        %v1275 = vunpack.c.l.bf16 %v1258
        %v1276 = vunpack.c.h.bf16 %v1258
        %v1277 = vunpack.c.l.bf16 %v1259
        %v1278 = vunpack.c.h.bf16 %v1259
        %v1279 = vunpack.c.l.bf16 %v1260
        %v1280 = vunpack.c.h.bf16 %v1260
        %v1281 = vunpack.c.l.bf16 %v1261
        %v1282 = vunpack.c.h.bf16 %v1261
        %v1283 = vunpack.c.l.bf16 %v1262
        %v1284 = vunpack.c.h.bf16 %v1262
        %v1285 = vunpack.c.l.bf16 %v1263
        %v1286 = vunpack.c.h.bf16 %v1263
        %v1287 = vunpack.c.l.bf16 %v1264
        %v1288 = vunpack.c.h.bf16 %v1264
        %s1289 = scalar_lea.vmem [#allocation5], 49
        %v1290 = vld [vmem:[%s1289] ss:$8 sm:$0xf]
        %v1291 = vld [vmem:[%s1289] ss:$8 sm:$0x30]
        %v1292 = vor.u32 %v1290, %v1291
        %v1294 = vlaneseq
        %v1295 = vshrl.u32 %v1294, 7
        %v1296 = vsub.s32 0, %v1295
        %v1297 = vrot.slane %v1292, %v1296
        %v1298 = vlaneseq
        %v1299 = vshrl.u32 %v1298, 7
        %v1300 = vsub.s32 1, %v1299
        %v1301 = vrot.slane %v1292, %v1300
        %v1302 = vlaneseq
        %v1303 = vshrl.u32 %v1302, 7
        %v1304 = vsub.s32 2, %v1303
        %v1305 = vrot.slane %v1292, %v1304
        %v1306 = vlaneseq
        %v1307 = vshrl.u32 %v1306, 7
        %v1308 = vsub.s32 3, %v1307
        %v1309 = vrot.slane %v1292, %v1308
        %v1310 = vlaneseq
        %v1311 = vshrl.u32 %v1310, 7
        %v1312 = vsub.s32 4, %v1311
        %v1313 = vrot.slane %v1292, %v1312
        %v1314 = vlaneseq
        %v1315 = vshrl.u32 %v1314, 7
        %v1316 = vsub.s32 5, %v1315
        %v1317 = vrot.slane %v1292, %v1316
        %v1324 = vmul.f32 %v1265, %v1297
        %v1325 = vmul.f32 %v1266, %v1301
        %v1326 = vmul.f32 %v1267, %v1305
        %v1327 = vmul.f32 %v1268, %v1309
        %v1328 = vmul.f32 %v1269, %v1313
        %v1329 = vmul.f32 %v1270, %v1317
        %v1330 = vmul.f32 %v1271, %v1297
        %v1331 = vmul.f32 %v1272, %v1301
        %v1332 = vmul.f32 %v1273, %v1305
        %v1333 = vmul.f32 %v1274, %v1309
        %v1334 = vmul.f32 %v1275, %v1313
        %v1335 = vmul.f32 %v1276, %v1317
        %v1336 = vmul.f32 %v1277, %v1297
        %v1337 = vmul.f32 %v1278, %v1301
        %v1338 = vmul.f32 %v1279, %v1305
        %v1339 = vmul.f32 %v1280, %v1309
        %v1340 = vmul.f32 %v1281, %v1313
        %v1341 = vmul.f32 %v1282, %v1317
        %v1342 = vmul.f32 %v1283, %v1297
        %v1343 = vmul.f32 %v1284, %v1301
        %v1344 = vmul.f32 %v1285, %v1305
        %v1345 = vmul.f32 %v1286, %v1309
        %v1346 = vmul.f32 %v1287, %v1313
        %v1347 = vmul.f32 %v1288, %v1317
        %v1348 = vadd.f32 %v1228, %v1324
        %v1349 = vadd.f32 %v1229, %v1325
        %v1350 = vadd.f32 %v1230, %v1326
        %v1351 = vadd.f32 %v1231, %v1327
        %v1352 = vadd.f32 %v1232, %v1328
        %v1353 = vadd.f32 %v1233, %v1329
        %v1354 = vadd.f32 %v1234, %v1330
        %v1355 = vadd.f32 %v1235, %v1331
        %v1356 = vadd.f32 %v1236, %v1332
        %v1357 = vadd.f32 %v1237, %v1333
        %v1358 = vadd.f32 %v1238, %v1334
        %v1359 = vadd.f32 %v1239, %v1335
        %v1360 = vadd.f32 %v1240, %v1336
        %v1361 = vadd.f32 %v1241, %v1337
        %v1362 = vadd.f32 %v1242, %v1338
        %v1363 = vadd.f32 %v1243, %v1339
        %v1364 = vadd.f32 %v1244, %v1340
        %v1365 = vadd.f32 %v1245, %v1341
        %v1366 = vadd.f32 %v1246, %v1342
        %v1367 = vadd.f32 %v1247, %v1343
        %v1368 = vadd.f32 %v1248, %v1344
        %v1369 = vadd.f32 %v1249, %v1345
        %v1370 = vadd.f32 %v1250, %v1346
        %v1371 = vadd.f32 %v1251, %v1347
        %s1372 = scalar_lea.vmem %s171, 960 [#allocation2]
        %v1373 = vld [vmem:[%s1372] sm:$0xff]
        %v1374 = vld [vmem:[%s1372 + $0x8] sm:$0xff]
        %v1375 = vld [vmem:[%s1372 + $0x10] sm:$0xff]
        %v1376 = vld [vmem:[%s1372 + $0x18] sm:$0xff]
        %v1377 = vld [vmem:[%s1372 + $0x20] sm:$0xff]
        %v1378 = vld [vmem:[%s1372 + $0x28] sm:$0xff]
        %v1379 = vld [vmem:[%s1372 + $0x30] sm:$0xff]
        %v1380 = vld [vmem:[%s1372 + $0x38] sm:$0xff]
        %v1381 = vld [vmem:[%s1372 + $0x40] sm:$0xff]
        %v1382 = vld [vmem:[%s1372 + $0x48] sm:$0xff]
        %v1383 = vld [vmem:[%s1372 + $0x50] sm:$0xff]
        %v1384 = vld [vmem:[%s1372 + $0x58] sm:$0xff]
        %v1385 = vunpack.c.l.bf16 %v1373
        %v1386 = vunpack.c.h.bf16 %v1373
        %v1387 = vunpack.c.l.bf16 %v1374
        %v1388 = vunpack.c.h.bf16 %v1374
        %v1389 = vunpack.c.l.bf16 %v1375
        %v1390 = vunpack.c.h.bf16 %v1375
        %v1391 = vunpack.c.l.bf16 %v1376
        %v1392 = vunpack.c.h.bf16 %v1376
        %v1393 = vunpack.c.l.bf16 %v1377
        %v1394 = vunpack.c.h.bf16 %v1377
        %v1395 = vunpack.c.l.bf16 %v1378
        %v1396 = vunpack.c.h.bf16 %v1378
        %v1397 = vunpack.c.l.bf16 %v1379
        %v1398 = vunpack.c.h.bf16 %v1379
        %v1399 = vunpack.c.l.bf16 %v1380
        %v1400 = vunpack.c.h.bf16 %v1380
        %v1401 = vunpack.c.l.bf16 %v1381
        %v1402 = vunpack.c.h.bf16 %v1381
        %v1403 = vunpack.c.l.bf16 %v1382
        %v1404 = vunpack.c.h.bf16 %v1382
        %v1405 = vunpack.c.l.bf16 %v1383
        %v1406 = vunpack.c.h.bf16 %v1383
        %v1407 = vunpack.c.l.bf16 %v1384
        %v1408 = vunpack.c.h.bf16 %v1384
        %s1409 = scalar_lea.vmem [#allocation5], 50
        %v1410 = vld [vmem:[%s1409] ss:$8 sm:$0xf]
        %v1411 = vld [vmem:[%s1409] ss:$8 sm:$0x30]
        %v1412 = vor.u32 %v1410, %v1411
        %v1414 = vlaneseq
        %v1415 = vshrl.u32 %v1414, 7
        %v1416 = vsub.s32 0, %v1415
        %v1417 = vrot.slane %v1412, %v1416
        %v1418 = vlaneseq
        %v1419 = vshrl.u32 %v1418, 7
        %v1420 = vsub.s32 1, %v1419
        %v1421 = vrot.slane %v1412, %v1420
        %v1422 = vlaneseq
        %v1423 = vshrl.u32 %v1422, 7
        %v1424 = vsub.s32 2, %v1423
        %v1425 = vrot.slane %v1412, %v1424
        %v1426 = vlaneseq
        %v1427 = vshrl.u32 %v1426, 7
        %v1428 = vsub.s32 3, %v1427
        %v1429 = vrot.slane %v1412, %v1428
        %v1430 = vlaneseq
        %v1431 = vshrl.u32 %v1430, 7
        %v1432 = vsub.s32 4, %v1431
        %v1433 = vrot.slane %v1412, %v1432
        %v1434 = vlaneseq
        %v1435 = vshrl.u32 %v1434, 7
        %v1436 = vsub.s32 5, %v1435
        %v1437 = vrot.slane %v1412, %v1436
        %v1444 = vmul.f32 %v1385, %v1417
        %v1445 = vmul.f32 %v1386, %v1421
        %v1446 = vmul.f32 %v1387, %v1425
        %v1447 = vmul.f32 %v1388, %v1429
        %v1448 = vmul.f32 %v1389, %v1433
        %v1449 = vmul.f32 %v1390, %v1437
        %v1450 = vmul.f32 %v1391, %v1417
        %v1451 = vmul.f32 %v1392, %v1421
        %v1452 = vmul.f32 %v1393, %v1425
        %v1453 = vmul.f32 %v1394, %v1429
        %v1454 = vmul.f32 %v1395, %v1433
        %v1455 = vmul.f32 %v1396, %v1437
        %v1456 = vmul.f32 %v1397, %v1417
        %v1457 = vmul.f32 %v1398, %v1421
        %v1458 = vmul.f32 %v1399, %v1425
        %v1459 = vmul.f32 %v1400, %v1429
        %v1460 = vmul.f32 %v1401, %v1433
        %v1461 = vmul.f32 %v1402, %v1437
        %v1462 = vmul.f32 %v1403, %v1417
        %v1463 = vmul.f32 %v1404, %v1421
        %v1464 = vmul.f32 %v1405, %v1425
        %v1465 = vmul.f32 %v1406, %v1429
        %v1466 = vmul.f32 %v1407, %v1433
        %v1467 = vmul.f32 %v1408, %v1437
        %v1468 = vadd.f32 %v1348, %v1444
        %v1469 = vadd.f32 %v1349, %v1445
        %v1470 = vadd.f32 %v1350, %v1446
        %v1471 = vadd.f32 %v1351, %v1447
        %v1472 = vadd.f32 %v1352, %v1448
        %v1473 = vadd.f32 %v1353, %v1449
        %v1474 = vadd.f32 %v1354, %v1450
        %v1475 = vadd.f32 %v1355, %v1451
        %v1476 = vadd.f32 %v1356, %v1452
        %v1477 = vadd.f32 %v1357, %v1453
        %v1478 = vadd.f32 %v1358, %v1454
        %v1479 = vadd.f32 %v1359, %v1455
        %v1480 = vadd.f32 %v1360, %v1456
        %v1481 = vadd.f32 %v1361, %v1457
        %v1482 = vadd.f32 %v1362, %v1458
        %v1483 = vadd.f32 %v1363, %v1459
        %v1484 = vadd.f32 %v1364, %v1460
        %v1485 = vadd.f32 %v1365, %v1461
        %v1486 = vadd.f32 %v1366, %v1462
        %v1487 = vadd.f32 %v1367, %v1463
        %v1488 = vadd.f32 %v1368, %v1464
        %v1489 = vadd.f32 %v1369, %v1465
        %v1490 = vadd.f32 %v1370, %v1466
        %v1491 = vadd.f32 %v1371, %v1467
        %s1492 = scalar_lea.vmem %s171, 1056 [#allocation2]
        %v1493 = vld [vmem:[%s1492] sm:$0xff]
        %v1494 = vld [vmem:[%s1492 + $0x8] sm:$0xff]
        %v1495 = vld [vmem:[%s1492 + $0x10] sm:$0xff]
        %v1496 = vld [vmem:[%s1492 + $0x18] sm:$0xff]
        %v1497 = vld [vmem:[%s1492 + $0x20] sm:$0xff]
        %v1498 = vld [vmem:[%s1492 + $0x28] sm:$0xff]
        %v1499 = vld [vmem:[%s1492 + $0x30] sm:$0xff]
        %v1500 = vld [vmem:[%s1492 + $0x38] sm:$0xff]
        %v1501 = vld [vmem:[%s1492 + $0x40] sm:$0xff]
        %v1502 = vld [vmem:[%s1492 + $0x48] sm:$0xff]
        %v1503 = vld [vmem:[%s1492 + $0x50] sm:$0xff]
        %v1504 = vld [vmem:[%s1492 + $0x58] sm:$0xff]
        %v1505 = vunpack.c.l.bf16 %v1493
        %v1506 = vunpack.c.h.bf16 %v1493
        %v1507 = vunpack.c.l.bf16 %v1494
        %v1508 = vunpack.c.h.bf16 %v1494
        %v1509 = vunpack.c.l.bf16 %v1495
        %v1510 = vunpack.c.h.bf16 %v1495
        %v1511 = vunpack.c.l.bf16 %v1496
        %v1512 = vunpack.c.h.bf16 %v1496
        %v1513 = vunpack.c.l.bf16 %v1497
        %v1514 = vunpack.c.h.bf16 %v1497
        %v1515 = vunpack.c.l.bf16 %v1498
        %v1516 = vunpack.c.h.bf16 %v1498
        %v1517 = vunpack.c.l.bf16 %v1499
        %v1518 = vunpack.c.h.bf16 %v1499
        %v1519 = vunpack.c.l.bf16 %v1500
        %v1520 = vunpack.c.h.bf16 %v1500
        %v1521 = vunpack.c.l.bf16 %v1501
        %v1522 = vunpack.c.h.bf16 %v1501
        %v1523 = vunpack.c.l.bf16 %v1502
        %v1524 = vunpack.c.h.bf16 %v1502
        %v1525 = vunpack.c.l.bf16 %v1503
        %v1526 = vunpack.c.h.bf16 %v1503
        %v1527 = vunpack.c.l.bf16 %v1504
        %v1528 = vunpack.c.h.bf16 %v1504
        %s1529 = scalar_lea.vmem [#allocation5], 51
        %v1530 = vld [vmem:[%s1529] ss:$8 sm:$0xf]
        %v1531 = vld [vmem:[%s1529] ss:$8 sm:$0x30]
        %v1532 = vor.u32 %v1530, %v1531
        %v1534 = vlaneseq
        %v1535 = vshrl.u32 %v1534, 7
        %v1536 = vsub.s32 0, %v1535
        %v1537 = vrot.slane %v1532, %v1536
        %v1538 = vlaneseq
        %v1539 = vshrl.u32 %v1538, 7
        %v1540 = vsub.s32 1, %v1539
        %v1541 = vrot.slane %v1532, %v1540
        %v1542 = vlaneseq
        %v1543 = vshrl.u32 %v1542, 7
        %v1544 = vsub.s32 2, %v1543
        %v1545 = vrot.slane %v1532, %v1544
        %v1546 = vlaneseq
        %v1547 = vshrl.u32 %v1546, 7
        %v1548 = vsub.s32 3, %v1547
        %v1549 = vrot.slane %v1532, %v1548
        %v1550 = vlaneseq
        %v1551 = vshrl.u32 %v1550, 7
        %v1552 = vsub.s32 4, %v1551
        %v1553 = vrot.slane %v1532, %v1552
        %v1554 = vlaneseq
        %v1555 = vshrl.u32 %v1554, 7
        %v1556 = vsub.s32 5, %v1555
        %v1557 = vrot.slane %v1532, %v1556
        %v1564 = vmul.f32 %v1505, %v1537
        %v1565 = vmul.f32 %v1506, %v1541
        %v1566 = vmul.f32 %v1507, %v1545
        %v1567 = vmul.f32 %v1508, %v1549
        %v1568 = vmul.f32 %v1509, %v1553
        %v1569 = vmul.f32 %v1510, %v1557
        %v1570 = vmul.f32 %v1511, %v1537
        %v1571 = vmul.f32 %v1512, %v1541
        %v1572 = vmul.f32 %v1513, %v1545
        %v1573 = vmul.f32 %v1514, %v1549
        %v1574 = vmul.f32 %v1515, %v1553
        %v1575 = vmul.f32 %v1516, %v1557
        %v1576 = vmul.f32 %v1517, %v1537
        %v1577 = vmul.f32 %v1518, %v1541
        %v1578 = vmul.f32 %v1519, %v1545
        %v1579 = vmul.f32 %v1520, %v1549
        %v1580 = vmul.f32 %v1521, %v1553
        %v1581 = vmul.f32 %v1522, %v1557
        %v1582 = vmul.f32 %v1523, %v1537
        %v1583 = vmul.f32 %v1524, %v1541
        %v1584 = vmul.f32 %v1525, %v1545
        %v1585 = vmul.f32 %v1526, %v1549
        %v1586 = vmul.f32 %v1527, %v1553
        %v1587 = vmul.f32 %v1528, %v1557
        %v1588 = vadd.f32 %v1468, %v1564
        %v1589 = vadd.f32 %v1469, %v1565
        %v1590 = vadd.f32 %v1470, %v1566
        %v1591 = vadd.f32 %v1471, %v1567
        %v1592 = vadd.f32 %v1472, %v1568
        %v1593 = vadd.f32 %v1473, %v1569
        %v1594 = vadd.f32 %v1474, %v1570
        %v1595 = vadd.f32 %v1475, %v1571
        %v1596 = vadd.f32 %v1476, %v1572
        %v1597 = vadd.f32 %v1477, %v1573
        %v1598 = vadd.f32 %v1478, %v1574
        %v1599 = vadd.f32 %v1479, %v1575
        %v1600 = vadd.f32 %v1480, %v1576
        %v1601 = vadd.f32 %v1481, %v1577
        %v1602 = vadd.f32 %v1482, %v1578
        %v1603 = vadd.f32 %v1483, %v1579
        %v1604 = vadd.f32 %v1484, %v1580
        %v1605 = vadd.f32 %v1485, %v1581
        %v1606 = vadd.f32 %v1486, %v1582
        %v1607 = vadd.f32 %v1487, %v1583
        %v1608 = vadd.f32 %v1488, %v1584
        %v1609 = vadd.f32 %v1489, %v1585
        %v1610 = vadd.f32 %v1490, %v1586
        %v1611 = vadd.f32 %v1491, %v1587
        %s1612 = scalar_lea.vmem %s171, 1152 [#allocation2]
        %v1613 = vld [vmem:[%s1612] sm:$0xff]
        %v1614 = vld [vmem:[%s1612 + $0x8] sm:$0xff]
        %v1615 = vld [vmem:[%s1612 + $0x10] sm:$0xff]
        %v1616 = vld [vmem:[%s1612 + $0x18] sm:$0xff]
        %v1617 = vld [vmem:[%s1612 + $0x20] sm:$0xff]
        %v1618 = vld [vmem:[%s1612 + $0x28] sm:$0xff]
        %v1619 = vld [vmem:[%s1612 + $0x30] sm:$0xff]
        %v1620 = vld [vmem:[%s1612 + $0x38] sm:$0xff]
        %v1621 = vld [vmem:[%s1612 + $0x40] sm:$0xff]
        %v1622 = vld [vmem:[%s1612 + $0x48] sm:$0xff]
        %v1623 = vld [vmem:[%s1612 + $0x50] sm:$0xff]
        %v1624 = vld [vmem:[%s1612 + $0x58] sm:$0xff]
        %v1625 = vunpack.c.l.bf16 %v1613
        %v1626 = vunpack.c.h.bf16 %v1613
        %v1627 = vunpack.c.l.bf16 %v1614
        %v1628 = vunpack.c.h.bf16 %v1614
        %v1629 = vunpack.c.l.bf16 %v1615
        %v1630 = vunpack.c.h.bf16 %v1615
        %v1631 = vunpack.c.l.bf16 %v1616
        %v1632 = vunpack.c.h.bf16 %v1616
        %v1633 = vunpack.c.l.bf16 %v1617
        %v1634 = vunpack.c.h.bf16 %v1617
        %v1635 = vunpack.c.l.bf16 %v1618
        %v1636 = vunpack.c.h.bf16 %v1618
        %v1637 = vunpack.c.l.bf16 %v1619
        %v1638 = vunpack.c.h.bf16 %v1619
        %v1639 = vunpack.c.l.bf16 %v1620
        %v1640 = vunpack.c.h.bf16 %v1620
        %v1641 = vunpack.c.l.bf16 %v1621
        %v1642 = vunpack.c.h.bf16 %v1621
        %v1643 = vunpack.c.l.bf16 %v1622
        %v1644 = vunpack.c.h.bf16 %v1622
        %v1645 = vunpack.c.l.bf16 %v1623
        %v1646 = vunpack.c.h.bf16 %v1623
        %v1647 = vunpack.c.l.bf16 %v1624
        %v1648 = vunpack.c.h.bf16 %v1624
        %s1649 = scalar_lea.vmem [#allocation5], 52
        %v1650 = vld [vmem:[%s1649] ss:$8 sm:$0xf]
        %v1651 = vld [vmem:[%s1649] ss:$8 sm:$0x30]
        %v1652 = vor.u32 %v1650, %v1651
        %v1654 = vlaneseq
        %v1655 = vshrl.u32 %v1654, 7
        %v1656 = vsub.s32 0, %v1655
        %v1657 = vrot.slane %v1652, %v1656
        %v1658 = vlaneseq
        %v1659 = vshrl.u32 %v1658, 7
        %v1660 = vsub.s32 1, %v1659
        %v1661 = vrot.slane %v1652, %v1660
        %v1662 = vlaneseq
        %v1663 = vshrl.u32 %v1662, 7
        %v1664 = vsub.s32 2, %v1663
        %v1665 = vrot.slane %v1652, %v1664
        %v1666 = vlaneseq
        %v1667 = vshrl.u32 %v1666, 7
        %v1668 = vsub.s32 3, %v1667
        %v1669 = vrot.slane %v1652, %v1668
        %v1670 = vlaneseq
        %v1671 = vshrl.u32 %v1670, 7
        %v1672 = vsub.s32 4, %v1671
        %v1673 = vrot.slane %v1652, %v1672
        %v1674 = vlaneseq
        %v1675 = vshrl.u32 %v1674, 7
        %v1676 = vsub.s32 5, %v1675
        %v1677 = vrot.slane %v1652, %v1676
        %v1684 = vmul.f32 %v1625, %v1657
        %v1685 = vmul.f32 %v1626, %v1661
        %v1686 = vmul.f32 %v1627, %v1665
        %v1687 = vmul.f32 %v1628, %v1669
        %v1688 = vmul.f32 %v1629, %v1673
        %v1689 = vmul.f32 %v1630, %v1677
        %v1690 = vmul.f32 %v1631, %v1657
        %v1691 = vmul.f32 %v1632, %v1661
        %v1692 = vmul.f32 %v1633, %v1665
        %v1693 = vmul.f32 %v1634, %v1669
        %v1694 = vmul.f32 %v1635, %v1673
        %v1695 = vmul.f32 %v1636, %v1677
        %v1696 = vmul.f32 %v1637, %v1657
        %v1697 = vmul.f32 %v1638, %v1661
        %v1698 = vmul.f32 %v1639, %v1665
        %v1699 = vmul.f32 %v1640, %v1669
        %v1700 = vmul.f32 %v1641, %v1673
        %v1701 = vmul.f32 %v1642, %v1677
        %v1702 = vmul.f32 %v1643, %v1657
        %v1703 = vmul.f32 %v1644, %v1661
        %v1704 = vmul.f32 %v1645, %v1665
        %v1705 = vmul.f32 %v1646, %v1669
        %v1706 = vmul.f32 %v1647, %v1673
        %v1707 = vmul.f32 %v1648, %v1677
        %v1708 = vadd.f32 %v1588, %v1684
        %v1709 = vadd.f32 %v1589, %v1685
        %v1710 = vadd.f32 %v1590, %v1686
        %v1711 = vadd.f32 %v1591, %v1687
        %v1712 = vadd.f32 %v1592, %v1688
        %v1713 = vadd.f32 %v1593, %v1689
        %v1714 = vadd.f32 %v1594, %v1690
        %v1715 = vadd.f32 %v1595, %v1691
        %v1716 = vadd.f32 %v1596, %v1692
        %v1717 = vadd.f32 %v1597, %v1693
        %v1718 = vadd.f32 %v1598, %v1694
        %v1719 = vadd.f32 %v1599, %v1695
        %v1720 = vadd.f32 %v1600, %v1696
        %v1721 = vadd.f32 %v1601, %v1697
        %v1722 = vadd.f32 %v1602, %v1698
        %v1723 = vadd.f32 %v1603, %v1699
        %v1724 = vadd.f32 %v1604, %v1700
        %v1725 = vadd.f32 %v1605, %v1701
        %v1726 = vadd.f32 %v1606, %v1702
        %v1727 = vadd.f32 %v1607, %v1703
        %v1728 = vadd.f32 %v1608, %v1704
        %v1729 = vadd.f32 %v1609, %v1705
        %v1730 = vadd.f32 %v1610, %v1706
        %v1731 = vadd.f32 %v1611, %v1707
        %v1732 = vpack.c.bf16 %v1714, %v1708
        %v1733 = vpack.c.bf16 %v1715, %v1709
        %v1734 = vpack.c.bf16 %v1716, %v1710
        %v1735 = vpack.c.bf16 %v1717, %v1711
        %v1736 = vpack.c.bf16 %v1718, %v1712
        %v1737 = vpack.c.bf16 %v1719, %v1713
        %v1738 = vpack.c.bf16 %v1726, %v1720
        %v1739 = vpack.c.bf16 %v1727, %v1721
        %v1740 = vpack.c.bf16 %v1728, %v1722
        %v1741 = vpack.c.bf16 %v1729, %v1723
        %v1742 = vpack.c.bf16 %v1730, %v1724
        %v1743 = vpack.c.bf16 %v1731, %v1725
        %v1756 = vunpack.c.l.b16 %v1732
        %v1757 = vunpack.c.l.b16 %v1733
        %v1758 = vunpack.c.l.b16 %v1734
        %v1759 = vunpack.c.l.b16 %v1735
        %v1760 = vunpack.c.l.b16 %v1736
        %v1761 = vunpack.c.l.b16 %v1737
        %v1762 = vunpack.c.h.b16 %v1732
        %v1763 = vunpack.c.h.b16 %v1733
        %v1764 = vunpack.c.h.b16 %v1734
        %v1765 = vunpack.c.h.b16 %v1735
        %v1766 = vunpack.c.h.b16 %v1736
        %v1767 = vunpack.c.h.b16 %v1737
        %v1768 = vunpack.c.l.b16 %v1738
        %v1769 = vunpack.c.l.b16 %v1739
        %v1770 = vunpack.c.l.b16 %v1740
        %v1771 = vunpack.c.l.b16 %v1741
        %v1772 = vunpack.c.l.b16 %v1742
        %v1773 = vunpack.c.l.b16 %v1743
        %v1774 = vunpack.c.h.b16 %v1738
        %v1775 = vunpack.c.h.b16 %v1739
        %v1776 = vunpack.c.h.b16 %v1740
        %v1777 = vunpack.c.h.b16 %v1741
        %v1778 = vunpack.c.h.b16 %v1742
        %v1779 = vunpack.c.h.b16 %v1743
        %v1780 = vpack.c.b16 %v1757, %v1756
        %v1781 = vpack.c.b16 %v1759, %v1758
        %v1782 = vpack.c.b16 %v1761, %v1760
        %v1783 = vpack.c.b16 %v1763, %v1762
        %v1784 = vpack.c.b16 %v1765, %v1764
        %v1785 = vpack.c.b16 %v1767, %v1766
        %v1786 = vpack.c.b16 %v1769, %v1768
        %v1787 = vpack.c.b16 %v1771, %v1770
        %v1788 = vpack.c.b16 %v1773, %v1772
        %v1789 = vpack.c.b16 %v1775, %v1774
        %v1790 = vpack.c.b16 %v1777, %v1776
        %v1791 = vpack.c.b16 %v1779, %v1778
        %1804 = vst [vmem:[%s195] sm:$0xff] %v1780
        %1805 = vst [vmem:[%s195 + $0x8] sm:$0xff] %v1781
        %1806 = vst [vmem:[%s195 + $0x10] sm:$0xff] %v1782
        %1807 = vst [vmem:[%s195 + $0x18] sm:$0xff] %v1783
        %1808 = vst [vmem:[%s195 + $0x20] sm:$0xff] %v1784
        %1809 = vst [vmem:[%s195 + $0x28] sm:$0xff] %v1785
        %1810 = vst [vmem:[%s195 + $0x30] sm:$0xff] %v1786
        %1811 = vst [vmem:[%s195 + $0x38] sm:$0xff] %v1787
        %1812 = vst [vmem:[%s195 + $0x40] sm:$0xff] %v1788
        %1813 = vst [vmem:[%s195 + $0x48] sm:$0xff] %v1789
        %1814 = vst [vmem:[%s195 + $0x50] sm:$0xff] %v1790
        %1815 = vst [vmem:[%s195 + $0x58] sm:$0xff] %v1791
        %s1816 = sand.u32 %s91, 1
        %s1817 = scalar_lea.sflag [#allocation4], %s1816
        %s1818 = sand.u32 %s91, 1
        %s1819 = smul.addr %s1818, 96
        %s1820 = scalar_lea.vmem [#allocation7], %s1819
        // Predicated region
        $region37: #{tpu_custom_call.1} parent=27 // pred_check
          %p1821 = pneg %p101
        $region38: #{tpu_custom_call.1} parent=27 // pred_check_branch
          %1823 = sbr.rel (%p1821) target = $region40
        $region39: #{tpu_custom_call.1} parent=27 // pred_region
          %s1824 = smul.u32 4, %s25
          %s1826 = ssub.s32 1536, 1536
          %1827 = vsyncadd %s1817, %s1826
          %s1828 = smul.addr %s1824, 6
          %s1829 = smul.addr %s24, 24
          %s1830 = sadd.s32 %s1828, %s1829
          %s1831 = smul.addr %s1830, 64
          %s1832 = scalar_lea.hbm %s2, %s1831
          %s1833 = sshll.u32 %s1820, 4
          %s1834 = int_to_ptr.vmem [resolvable:$true] %s1833
          %1839 = dma.vmem_to_hbm [thread:$0]  %s1834, 1536, %s1832, %s1817, 384, 384, 24
        $region40: #{tpu_custom_call.1} parent=27 // pred_fallthru
          _
      $region28: #{tpu_custom_call.1} parent=5 // pred_fallthru
        _
      %p1840 = scmp.le.s32.totalorder 2, %s15
      // Predicated region
      $region41: #{tpu_custom_call.1} parent=5 // pred_check
        %p1841 = pneg %p1840
      $region42: #{tpu_custom_call.1} parent=5 // pred_check_branch
        %1843 = sbr.rel (%p1841) target = $region44
      $region43: #{tpu_custom_call.1} parent=5 // pred_region
        %s1844 = ssub.s32 %s15, 2
        // Predicated region
        $region45: #{tpu_custom_call.1} parent=43 // pred_check
          %p1845 = pneg %p107
        $region46: #{tpu_custom_call.1} parent=43 // pred_check_branch
          %1847 = sbr.rel (%p1845) target = $region48
        $region47: #{tpu_custom_call.1} parent=43 // pred_region
          %s1848 = sand.u32 %s92, 1
          %s1849 = scalar_lea.sflag [#allocation4], %s1848
          %s1850 = sand.u32 %s92, 1
          %s1851 = smul.addr %s1850, 96
          %s1852 = scalar_lea.vmem [#allocation7], %s1851
          %1853 = dma.done %s1849, 1536
        $region48: #{tpu_custom_call.1} parent=43 // pred_fallthru
          _
      $region44: #{tpu_custom_call.1} parent=5 // pred_fallthru
        _
    $region6: #{tpu_custom_call.1} parent=1 // loop_footer
      %s19 = sadd.s32 1, %s15
    $region7: #{tpu_custom_call.1} parent=1 // loop_footer_branch
      %14 = sbr.rel target = $region3
    $region8: #{tpu_custom_call.1} parent=1 // loop_exit
      _
    %1854 = vsyncpa [#allocation3], 1
    %s1855 = scalar_lea.sflag [#allocation3], 1
    %1856 = vsyncpa %s1855, 1
    %1857 = vsyncpa [#allocation6], 1
    %1858 = vsyncpa [#allocation4], 1
    %s1859 = scalar_lea.sflag [#allocation4], 1
    %1860 = vsyncpa %s1859, 1

</llo_original>
